<compile_context>
chip_gen: v6e
topology: v6e:2x2x1
jax: 0.10.0
libtpu: 0.0.40
codegen_flags: <defaults>
</compile_context>

<pallas_src>
import functools

import jax
import jax.numpy as jnp
from jax.experimental import pallas as pl
from jax.experimental.pallas import tpu as pltpu


def _round_up(x: int, m: int) -> int:
    return (x + m - 1) // m * m


def _choose_tiling(batch: int, tile_m: int):
    """Pick (tile_m_eff, padded_batch).

    Small batches (< 512 rows): one grid step, M padded only to the bf16
    sublane pack (16).  Large batches: big tiles (up to `tile_m`) but capped so
    the grid has >= 2 steps (both v7x TensorCores stay busy).
    """
    if batch < 512:
        t = _round_up(max(batch, 8), 16)
        return t, t
    b128 = _round_up(batch, 128)
    t = min(tile_m, (b128 // 2 // 128) * 128)
    t = max(t, 128)
    return t, _round_up(batch, t)


def _mlp_kernel(x_ref, w1_ref, b1_ref, w2_ref, b2_ref, w3_ref, b3_ref,
                w4_ref, b4_ref, o_ref):
    # x / weights: bf16, biases: f32.  Matmuls accumulate in f32 on the MXU;
    # bias-add + ReLU run in f32 on the VPU; activations are cast back to bf16
    # before the next MXU pass.  Final store is bf16 (halves HBM writeback).
    h = jnp.dot(x_ref[...], w1_ref[...], preferred_element_type=jnp.float32)
    h = jnp.maximum(h + b1_ref[...], 0.0).astype(jnp.bfloat16)   # Dropout = id (eval)
    h = jnp.dot(h, w2_ref[...], preferred_element_type=jnp.float32)
    h = jnp.maximum(h + b2_ref[...], 0.0).astype(jnp.bfloat16)
    h = jnp.dot(h, w3_ref[...], preferred_element_type=jnp.float32)
    h = jnp.maximum(h + b3_ref[...], 0.0).astype(jnp.bfloat16)
    out = jnp.dot(h, w4_ref[...], preferred_element_type=jnp.float32) + b4_ref[...]
    o_ref[...] = out.astype(o_ref.dtype)


def prepare_params(params):
    """One-time cast/pad of the weights: f32 (in, out) -> lane-padded bf16.

    Call once and reuse the result for every forward; this removes the
    per-call weight re-cast/re-pad XLA ops that previously dominated small
    batch wall time.
    """
    (w1, b1), (w2, b2), (w3, b3), (w4, b4) = params
    din, h1 = w1.shape
    h2 = w2.shape[1]
    dout = w4.shape[1]
    din_p = _round_up(din, 128)
    dout_p = _round_up(dout, 128)

    w1_p = jnp.zeros((din_p, h1), jnp.bfloat16).at[:din, :].set(w1.astype(jnp.bfloat16))
    w2_p = w2.astype(jnp.bfloat16)
    w3_p = w3.astype(jnp.bfloat16)
    w4_p = jnp.zeros((h2, dout_p), jnp.bfloat16).at[:, :dout].set(w4.astype(jnp.bfloat16))
    b1_p = b1.reshape(1, -1).astype(jnp.float32)
    b2_p = b2.reshape(1, -1).astype(jnp.float32)
    b3_p = b3.reshape(1, -1).astype(jnp.float32)
    b4_p = jnp.zeros((1, dout_p), jnp.float32).at[:, :dout].set(
        b4.reshape(1, -1).astype(jnp.float32))
    return (w1_p, b1_p, w2_p, b2_p, w3_p, b3_p, w4_p, b4_p)


def atmosphere_net_mlp(x, prepared_params, *, depth_points, output_size, tile_m=1024):
    """x: (batch, depth_points, input_size) f32 -> (batch, depth_points, output_size) f32."""
    w1_p, b1_p, w2_p, b2_p, w3_p, b3_p, w4_p, b4_p = prepared_params
    B = x.shape[0]
    din = x.shape[1] * x.shape[2]
    dout = depth_points * output_size
    din_p = w1_p.shape[0]
    dout_p = w4_p.shape[1]
    h1 = w1_p.shape[1]
    h2 = w2_p.shape[1]
    assert din <= din_p and dout <= dout_p

    tile_m_eff, b_pad = _choose_tiling(B, tile_m)

    # Single pad+cast op for the input (no redundant f32 round-trip).
    x_p = jnp.zeros((b_pad, din_p), jnp.bfloat16)
    x_p = x_p.at[:B, :din].set(x.reshape(B, -1).astype(jnp.bfloat16))

    def full_spec(arr):
        # Whole weight / bias resident for every grid step (constant block index).
        return pl.BlockSpec(arr.shape, lambda i: (0, 0))

    flops = 2 * b_pad * (din_p * h1 + h1 * h2 + h2 * h2 + h2 * dout_p)
    weight_bytes = sum(int(t.size) * t.dtype.itemsize for t in prepared_params)
    bytes_accessed = int(x_p.size) * 2 + b_pad * dout_p * 2 + weight_bytes
    cost = pl.CostEstimate(flops=flops, transcendentals=0,
                           bytes_accessed=bytes_accessed)

    out_flat = pl.pallas_call(
        _mlp_kernel,
        out_shape=jax.ShapeDtypeStruct((b_pad, dout_p), jnp.bfloat16),
        grid_spec=pltpu.PrefetchScalarGridSpec(
            num_scalar_prefetch=0,
            grid=(b_pad // tile_m_eff,),
            in_specs=[
                pl.BlockSpec((tile_m_eff, din_p), lambda i: (i, 0)),
                full_spec(w1_p), full_spec(b1_p),
                full_spec(w2_p), full_spec(b2_p),
                full_spec(w3_p), full_spec(b3_p),
                full_spec(w4_p), full_spec(b4_p),
            ],
            out_specs=pl.BlockSpec((tile_m_eff, dout_p), lambda i: (i, 0)),
        ),
        compiler_params=pltpu.CompilerParams(
            dimension_semantics=("parallel",),
        ),
        cost_estimate=cost,
    )(x_p, w1_p, b1_p, w2_p, b2_p, w3_p, b3_p, w4_p, b4_p)

    out = out_flat[:B, :dout].astype(jnp.float32)
    return out.reshape(B, depth_points, output_size)


def init_params(key, input_size, hidden_size, output_size, depth_points):
    """Deterministic init mimicking torch.nn.Linear default (uniform +/- 1/sqrt(fan_in))."""
    din = input_size * depth_points
    dout = output_size * depth_points
    dims = [(din, hidden_size),
            (hidden_size, hidden_size * 2),
            (hidden_size * 2, hidden_size * 2),
            (hidden_size * 2, dout)]
    params = []
    for fan_in, fan_out in dims:
        key, kw, kb = jax.random.split(key, 3)
        bound = float(fan_in) ** -0.5
        # stored as (in, out) so the kernel does x @ W
        w = jax.random.uniform(kw, (fan_in, fan_out), jnp.float32, -bound, bound)
        b = jax.random.uniform(kb, (fan_out,), jnp.float32, -bound, bound)
        params.append((w, b))
    return params


def _reference_forward_f32(x, params, depth_points, output_size):
    (w1, b1), (w2, b2), (w3, b3), (w4, b4) = params
    B = x.shape[0]
    h = x.reshape(B, -1)
    h = jnp.maximum(h @ w1 + b1, 0.0)
    h = jnp.maximum(h @ w2 + b2, 0.0)
    h = jnp.maximum(h @ w3 + b3, 0.0)
    h = h @ w4 + b4
    return h.reshape(B, depth_points, output_size)


def _reference_forward_bf16(x, params, depth_points, output_size):
    # Mirrors the kernel's numerics: bf16 matmul inputs, f32 accumulation,
    # f32 bias-add / ReLU, final result rounded to bf16 (kernel's output dtype).
    (w1, b1), (w2, b2), (w3, b3), (w4, b4) = params
    B = x.shape[0]

    def lin(h, w, b):
        return jnp.dot(h.astype(jnp.bfloat16), w.astype(jnp.bfloat16),
                       preferred_element_type=jnp.float32) + b

    h = x.reshape(B, -1)
    h = jnp.maximum(lin(h, w1, b1), 0.0)
    h = jnp.maximum(lin(h, w2, b2), 0.0)
    h = jnp.maximum(lin(h, w3, b3), 0.0)
    h = lin(h, w4, b4).astype(jnp.bfloat16).astype(jnp.float32)
    return h.reshape(B, depth_points, output_size)


def _check(out, x, params, depth_points, output_size):
    # Tight check against a reference matching the kernel's bf16/f32 numerics.
    ref_bf16 = _reference_forward_bf16(x, params, depth_points, output_size)
    assert jnp.allclose(out, ref_bf16, atol=2e-2, rtol=2e-2), \
        float(jnp.max(jnp.abs(out - ref_bf16)))
    # Loose sanity check against the pure-f32 reference (bf16 weights/output).
    ref_f32 = _reference_forward_f32(x, params, depth_points, output_size)
    assert jnp.allclose(out, ref_f32, atol=5e-2, rtol=5e-2), \
        float(jnp.max(jnp.abs(out - ref_f32)))


if __name__ == "__main__":
    input_size = 5
    hidden_size = 256
    output_size = 6
    depth_points = 80
    batch = 8

    key = jax.random.PRNGKey(0)
    kx, kp, kx2 = jax.random.split(key, 3)
    x = jax.random.normal(kx, (batch, depth_points, input_size), jnp.float32)
    params = init_params(kp, input_size, hidden_size, output_size, depth_points)

    # One-time weight cast/pad (hoisted out of the per-call path).
    prepared = jax.block_until_ready(prepare_params(params))

    fwd = jax.jit(functools.partial(atmosphere_net_mlp,
                                    depth_points=depth_points,
                                    output_size=output_size))

    # Small-batch path (single 16-row grid step).
    out = jax.block_until_ready(fwd(x, prepared))
    assert out.shape == (batch, depth_points, output_size)
    _check(out, x, params, depth_points, output_size)

    # Larger batch exercises the multi-step tiled grid (row padding + parallel axis).
    batch2 = 600
    x2 = jax.random.normal(kx2, (batch2, depth_points, input_size), jnp.float32)
    out2 = jax.block_until_ready(fwd(x2, prepared))
    assert out2.shape == (batch2, depth_points, output_size)
    _check(out2, x2, params, depth_points, output_size)

    print("KERNEL_OK")
</pallas_src>

<mosaic_0001>
module attributes {stable_mosaic.version = 11 : i64} {
  func.func @_mlp_kernel(%arg0: i32, %arg1: memref<16x512xbf16, #tpu.memory_space<vmem>>, %arg2: memref<512x256xbf16, #tpu.memory_space<vmem>>, %arg3: memref<1x256xf32, #tpu.memory_space<vmem>>, %arg4: memref<256x512xbf16, #tpu.memory_space<vmem>>, %arg5: memref<1x512xf32, #tpu.memory_space<vmem>>, %arg6: memref<512x512xbf16, #tpu.memory_space<vmem>>, %arg7: memref<1x512xf32, #tpu.memory_space<vmem>>, %arg8: memref<512x512xbf16, #tpu.memory_space<vmem>>, %arg9: memref<1x512xf32, #tpu.memory_space<vmem>>, %arg10: memref<16x512xbf16, #tpu.memory_space<vmem>>) attributes {dimension_semantics = [#tpu.dimension_semantics<parallel>], iteration_bounds = array<i64: 1>, scalar_prefetch = 0 : i64, scratch_operands = 0 : i64, tpu.core_type = #tpu.core_type<tc>, window_params = [{transform_indices = @transform_0, window_bounds = array<i64: 16, 512>}, {pipeline_mode = #tpu.pipeline_mode<synchronous>, transform_indices = @transform_1, window_bounds = array<i64: 512, 256>}, {pipeline_mode = #tpu.pipeline_mode<synchronous>, transform_indices = @transform_2, window_bounds = array<i64: 1, 256>}, {pipeline_mode = #tpu.pipeline_mode<synchronous>, transform_indices = @transform_3, window_bounds = array<i64: 256, 512>}, {pipeline_mode = #tpu.pipeline_mode<synchronous>, transform_indices = @transform_4, window_bounds = array<i64: 1, 512>}, {pipeline_mode = #tpu.pipeline_mode<synchronous>, transform_indices = @transform_5, window_bounds = array<i64: 512, 512>}, {pipeline_mode = #tpu.pipeline_mode<synchronous>, transform_indices = @transform_6, window_bounds = array<i64: 1, 512>}, {pipeline_mode = #tpu.pipeline_mode<synchronous>, transform_indices = @transform_7, window_bounds = array<i64: 512, 512>}, {pipeline_mode = #tpu.pipeline_mode<synchronous>, transform_indices = @transform_8, window_bounds = array<i64: 1, 512>}, {transform_indices = @transform_9, window_bounds = array<i64: 16, 512>}]} {
    %c0 = arith.constant 0 : index
    %c0_0 = arith.constant 0 : index
    %0 = vector.load %arg1[%c0, %c0_0] : memref<16x512xbf16, #tpu.memory_space<vmem>>, vector<16x512xbf16>
    %c0_1 = arith.constant 0 : index
    %c0_2 = arith.constant 0 : index
    %1 = vector.load %arg2[%c0_1, %c0_2] : memref<512x256xbf16, #tpu.memory_space<vmem>>, vector<512x256xbf16>
    %cst = arith.constant dense<0.000000e+00> : vector<16x256xf32>
    %2 = tpu.matmul %0, %1, %cst {dimension_numbers = #tpu.dot_dimension_numbers<[1], [0], [0], [1], [0, 0, 1, 1], [], []>} : vector<16x512xbf16>, vector<512x256xbf16>, vector<16x256xf32> -> vector<16x256xf32>
    %c0_3 = arith.constant 0 : index
    %c0_4 = arith.constant 0 : index
    %3 = vector.load %arg3[%c0_3, %c0_4] : memref<1x256xf32, #tpu.memory_space<vmem>>, vector<1x256xf32>
    %4 = vector.broadcast %3 : vector<1x256xf32> to vector<16x256xf32>
    %5 = arith.addf %2, %4 : vector<16x256xf32>
    %cst_5 = arith.constant 0.000000e+00 : f32
    %6 = vector.broadcast %cst_5 : f32 to vector<16x256xf32>
    %7 = arith.maximumf %5, %6 : vector<16x256xf32>
    %8 = arith.truncf %7 : vector<16x256xf32> to vector<16x256xbf16>
    %c0_6 = arith.constant 0 : index
    %c0_7 = arith.constant 0 : index
    %9 = vector.load %arg4[%c0_6, %c0_7] : memref<256x512xbf16, #tpu.memory_space<vmem>>, vector<256x512xbf16>
    %cst_8 = arith.constant dense<0.000000e+00> : vector<16x512xf32>
    %10 = tpu.matmul %8, %9, %cst_8 {dimension_numbers = #tpu.dot_dimension_numbers<[1], [0], [0], [1], [0, 0, 1, 1], [], []>} : vector<16x256xbf16>, vector<256x512xbf16>, vector<16x512xf32> -> vector<16x512xf32>
    %c0_9 = arith.constant 0 : index
    %c0_10 = arith.constant 0 : index
    %11 = vector.load %arg5[%c0_9, %c0_10] : memref<1x512xf32, #tpu.memory_space<vmem>>, vector<1x512xf32>
    %12 = vector.broadcast %11 : vector<1x512xf32> to vector<16x512xf32>
    %13 = arith.addf %10, %12 : vector<16x512xf32>
    %cst_11 = arith.constant 0.000000e+00 : f32
    %14 = vector.broadcast %cst_11 : f32 to vector<16x512xf32>
    %15 = arith.maximumf %13, %14 : vector<16x512xf32>
    %16 = arith.truncf %15 : vector<16x512xf32> to vector<16x512xbf16>
    %c0_12 = arith.constant 0 : index
    %c0_13 = arith.constant 0 : index
    %17 = vector.load %arg6[%c0_12, %c0_13] : memref<512x512xbf16, #tpu.memory_space<vmem>>, vector<512x512xbf16>
    %cst_14 = arith.constant dense<0.000000e+00> : vector<16x512xf32>
    %18 = tpu.matmul %16, %17, %cst_14 {dimension_numbers = #tpu.dot_dimension_numbers<[1], [0], [0], [1], [0, 0, 1, 1], [], []>} : vector<16x512xbf16>, vector<512x512xbf16>, vector<16x512xf32> -> vector<16x512xf32>
    %c0_15 = arith.constant 0 : index
    %c0_16 = arith.constant 0 : index
    %19 = vector.load %arg7[%c0_15, %c0_16] : memref<1x512xf32, #tpu.memory_space<vmem>>, vector<1x512xf32>
    %20 = vector.broadcast %19 : vector<1x512xf32> to vector<16x512xf32>
    %21 = arith.addf %18, %20 : vector<16x512xf32>
    %cst_17 = arith.constant 0.000000e+00 : f32
    %22 = vector.broadcast %cst_17 : f32 to vector<16x512xf32>
    %23 = arith.maximumf %21, %22 : vector<16x512xf32>
    %24 = arith.truncf %23 : vector<16x512xf32> to vector<16x512xbf16>
    %c0_18 = arith.constant 0 : index
    %c0_19 = arith.constant 0 : index
    %25 = vector.load %arg8[%c0_18, %c0_19] : memref<512x512xbf16, #tpu.memory_space<vmem>>, vector<512x512xbf16>
    %cst_20 = arith.constant dense<0.000000e+00> : vector<16x512xf32>
    %26 = tpu.matmul %24, %25, %cst_20 {dimension_numbers = #tpu.dot_dimension_numbers<[1], [0], [0], [1], [0, 0, 1, 1], [], []>} : vector<16x512xbf16>, vector<512x512xbf16>, vector<16x512xf32> -> vector<16x512xf32>
    %c0_21 = arith.constant 0 : index
    %c0_22 = arith.constant 0 : index
    %27 = vector.load %arg9[%c0_21, %c0_22] : memref<1x512xf32, #tpu.memory_space<vmem>>, vector<1x512xf32>
    %28 = vector.broadcast %27 : vector<1x512xf32> to vector<16x512xf32>
    %29 = arith.addf %26, %28 : vector<16x512xf32>
    %30 = arith.truncf %29 : vector<16x512xf32> to vector<16x512xbf16>
    %c0_23 = arith.constant 0 : index
    %c0_24 = arith.constant 0 : index
    %31 = vector.load %arg10[%c0_23, %c0_24] : memref<16x512xbf16, #tpu.memory_space<vmem>>, vector<16x512xbf16>
    tpu.vector_store %arg10[%c0_23, %c0_24], %30 {strides = array<i32>} : memref<16x512xbf16, #tpu.memory_space<vmem>>, vector<16x512xbf16>,
    return
  }
  func.func @transform_0(%arg0: i32) -> (i32, i32) {
    %c0_i32 = arith.constant 0 : i32
    %c0_i32_0 = arith.constant 0 : i32
    return %arg0, %c0_i32 : i32, i32
  }
  func.func @transform_1(%arg0: i32) -> (i32, i32) {
    %c0_i32 = arith.constant 0 : i32
    %c0_i32_0 = arith.constant 0 : i32
    %c0_i32_1 = arith.constant 0 : i32
    return %c0_i32, %c0_i32_0 : i32, i32
  }
  func.func @transform_2(%arg0: i32) -> (i32, i32) {
    %c0_i32 = arith.constant 0 : i32
    %c0_i32_0 = arith.constant 0 : i32
    %c0_i32_1 = arith.constant 0 : i32
    return %c0_i32, %c0_i32_0 : i32, i32
  }
  func.func @transform_3(%arg0: i32) -> (i32, i32) {
    %c0_i32 = arith.constant 0 : i32
    %c0_i32_0 = arith.constant 0 : i32
    %c0_i32_1 = arith.constant 0 : i32
    return %c0_i32, %c0_i32_0 : i32, i32
  }
  func.func @transform_4(%arg0: i32) -> (i32, i32) {
    %c0_i32 = arith.constant 0 : i32
    %c0_i32_0 = arith.constant 0 : i32
    %c0_i32_1 = arith.constant 0 : i32
    return %c0_i32, %c0_i32_0 : i32, i32
  }
  func.func @transform_5(%arg0: i32) -> (i32, i32) {
    %c0_i32 = arith.constant 0 : i32
    %c0_i32_0 = arith.constant 0 : i32
    %c0_i32_1 = arith.constant 0 : i32
    return %c0_i32, %c0_i32_0 : i32, i32
  }
  func.func @transform_6(%arg0: i32) -> (i32, i32) {
    %c0_i32 = arith.constant 0 : i32
    %c0_i32_0 = arith.constant 0 : i32
    %c0_i32_1 = arith.constant 0 : i32
    return %c0_i32, %c0_i32_0 : i32, i32
  }
  func.func @transform_7(%arg0: i32) -> (i32, i32) {
    %c0_i32 = arith.constant 0 : i32
    %c0_i32_0 = arith.constant 0 : i32
    %c0_i32_1 = arith.constant 0 : i32
    return %c0_i32, %c0_i32_0 : i32, i32
  }
  func.func @transform_8(%arg0: i32) -> (i32, i32) {
    %c0_i32 = arith.constant 0 : i32
    %c0_i32_0 = arith.constant 0 : i32
    %c0_i32_1 = arith.constant 0 : i32
    return %c0_i32, %c0_i32_0 : i32, i32
  }
  func.func @transform_9(%arg0: i32) -> (i32, i32) {
    %c0_i32 = arith.constant 0 : i32
    %c0_i32_0 = arith.constant 0 : i32
    return %arg0, %c0_i32 : i32, i32
  }
}

</mosaic_0001>

<llo_original>
// kernel: atmosphere_net_mlp.1
$region0: #{atmosphere_net_mlp.1}
  #allocation0 [shape = 'u32[]', space=smem, size = 0x4, offset = 0x4, fixed_abs, tag = 'smem constant byte address 0x4 - core index']
  #allocation1 [shape = 'u32[144,128]{1,0:T(1,128)}', space=vmem, size = 0x12000, scoped, tag = 'internal scratch']
  %s0 = inlined_call_operand.vmem [shape: bf16[16,512], index: 0, kind: input, shape index: {}]
  %s1 = inlined_call_operand.vmem [shape: bf16[512,256], index: 1, kind: input, shape index: {}]
  %s2 = inlined_call_operand.vmem [shape: f32[1,256], index: 2, kind: input, shape index: {}]
  %s3 = inlined_call_operand.hbm [shape: bf16[256,512], index: 3, kind: input, shape index: {}]
  %s4 = inlined_call_operand.vmem [shape: f32[1,512], index: 4, kind: input, shape index: {}]
  %s5 = inlined_call_operand.hbm [shape: bf16[512,512], index: 5, kind: input, shape index: {}]
  %s6 = inlined_call_operand.vmem [shape: f32[1,512], index: 6, kind: input, shape index: {}]
  %s7 = inlined_call_operand.hbm [shape: bf16[512,512], index: 7, kind: input, shape index: {}]
  %s8 = inlined_call_operand.vmem [shape: f32[1,512], index: 8, kind: input, shape index: {}]
  %s9 = inlined_call_operand.vmem [shape: bf16[16,512], index: 9, kind: output, shape index: {}]
  %s10 = sld [smem:[#allocation0]]
  $region58: #{atmosphere_net_mlp.1} parent=0
    _
  %s12 = ssub.s32 1, %s10
  %s13 = scalar_select 0, %s12, %s10
  $region1: #{atmosphere_net_mlp.1} parent=0
    #allocation2 [shape = 'u8[262144]{0}', space=vmem, size = 0x40000, scoped, tag = 'input window, operand 3, single buffered']
    #allocation3 [shape = 's32[1]{0}', space=sflag, size = 0x4, scoped, tag = 'scoped memory for atmosphere_net_mlp.1']
    #allocation4 [shape = 'u8[524288]{0}', space=vmem, size = 0x80000, scoped, tag = 'input window, operand 5, single buffered']
    #allocation5 [shape = 's32[1]{0}', space=sflag, size = 0x4, scoped, tag = 'scoped memory for atmosphere_net_mlp.1']
    #allocation6 [shape = 'u8[524288]{0}', space=vmem, size = 0x80000, scoped, tag = 'input window, operand 7, single buffered']
    %14 = vsyncpa [#allocation3], 0
    %15 = vsyncpa [#allocation5], 0
    // Predicated region
    $region2: #{atmosphere_net_mlp.1} parent=1 // pred_check
      _
    $region3: #{atmosphere_net_mlp.1} parent=1 // pred_check_branch
      %17 = sbr.rel (0) target = $region5
    $region4: #{atmosphere_net_mlp.1} parent=1 // pred_region
      _
    $region5: #{atmosphere_net_mlp.1} parent=1 // pred_fallthru
      _
    // Predicated region
    $region6: #{atmosphere_net_mlp.1} parent=1 // pred_check
      _
    $region7: #{atmosphere_net_mlp.1} parent=1 // pred_check_branch
      %19 = sbr.rel (0) target = $region9
    $region8: #{atmosphere_net_mlp.1} parent=1 // pred_region
      _
    $region9: #{atmosphere_net_mlp.1} parent=1 // pred_fallthru
      _
    // Predicated region
    $region10: #{atmosphere_net_mlp.1} parent=1 // pred_check
      _
    $region11: #{atmosphere_net_mlp.1} parent=1 // pred_check_branch
      %21 = sbr.rel (0) target = $region13
    $region12: #{atmosphere_net_mlp.1} parent=1 // pred_region
      _
    $region13: #{atmosphere_net_mlp.1} parent=1 // pred_fallthru
      _
    // Predicated region
    $region14: #{atmosphere_net_mlp.1} parent=1 // pred_check
      _
    $region15: #{atmosphere_net_mlp.1} parent=1 // pred_check_branch
      %23 = sbr.rel (0) target = $region17
    $region16: #{atmosphere_net_mlp.1} parent=1 // pred_region
      %s25 = ssub.s32 8192, 8192
      %26 = vsyncadd [#allocation3], %s25
      %s27 = sshll.u32 [#allocation2], 4
      %s28 = int_to_ptr.vmem [resolvable:$true] %s27
      %33 = dma.hbm_to_vmem [thread:$0]  %s3, 8192, %s28, [#allocation3], 256, 256, 16
    $region17: #{atmosphere_net_mlp.1} parent=1 // pred_fallthru
      _
    // Predicated region
    $region18: #{atmosphere_net_mlp.1} parent=1 // pred_check
      _
    $region19: #{atmosphere_net_mlp.1} parent=1 // pred_check_branch
      %35 = sbr.rel (0) target = $region21
    $region20: #{atmosphere_net_mlp.1} parent=1 // pred_region
      _
    $region21: #{atmosphere_net_mlp.1} parent=1 // pred_fallthru
      _
    // Predicated region
    $region22: #{atmosphere_net_mlp.1} parent=1 // pred_check
      _
    $region23: #{atmosphere_net_mlp.1} parent=1 // pred_check_branch
      %37 = sbr.rel (0) target = $region25
    $region24: #{atmosphere_net_mlp.1} parent=1 // pred_region
      %s39 = ssub.s32 16384, 16384
      %40 = vsyncadd [#allocation5], %s39
      %s41 = sshll.u32 [#allocation4], 4
      %s42 = int_to_ptr.vmem [resolvable:$true] %s41
      %47 = dma.hbm_to_vmem [thread:$0]  %s5, 16384, %s42, [#allocation5], 256, 256, 16
    $region25: #{atmosphere_net_mlp.1} parent=1 // pred_fallthru
      _
    // Predicated region
    $region26: #{atmosphere_net_mlp.1} parent=1 // pred_check
      _
    $region27: #{atmosphere_net_mlp.1} parent=1 // pred_check_branch
      %49 = sbr.rel (0) target = $region29
    $region28: #{atmosphere_net_mlp.1} parent=1 // pred_region
      _
    $region29: #{atmosphere_net_mlp.1} parent=1 // pred_fallthru
      _
    // Predicated region
    $region30: #{atmosphere_net_mlp.1} parent=1 // pred_check
      _
    $region31: #{atmosphere_net_mlp.1} parent=1 // pred_check_branch
      %51 = sbr.rel (0) target = $region33
    $region32: #{atmosphere_net_mlp.1} parent=1 // pred_region
      %s53 = ssub.s32 16384, 16384
      %54 = vsyncadd [#allocation5], %s53
      %s55 = sshll.u32 [#allocation6], 4
      %s56 = int_to_ptr.vmem [resolvable:$true] %s55
      %61 = dma.hbm_to_vmem [thread:$0]  %s7, 16384, %s56, [#allocation5], 256, 256, 16
    $region33: #{atmosphere_net_mlp.1} parent=1 // pred_fallthru
      _
    // Predicated region
    $region34: #{atmosphere_net_mlp.1} parent=1 // pred_check
      _
    $region35: #{atmosphere_net_mlp.1} parent=1 // pred_check_branch
      %63 = sbr.rel (0) target = $region37
    $region36: #{atmosphere_net_mlp.1} parent=1 // pred_region
      _
    $region37: #{atmosphere_net_mlp.1} parent=1 // pred_fallthru
      _
    // Predicated region
    $region38: #{atmosphere_net_mlp.1} parent=1 // pred_check
      _
    $region39: #{atmosphere_net_mlp.1} parent=1 // pred_check_branch
      %65 = sbr.rel (0) target = $region41
    $region40: #{atmosphere_net_mlp.1} parent=1 // pred_region
      %66 = dma.done [#allocation3], 8192
    $region41: #{atmosphere_net_mlp.1} parent=1 // pred_fallthru
      _
    // Predicated region
    $region42: #{atmosphere_net_mlp.1} parent=1 // pred_check
      _
    $region43: #{atmosphere_net_mlp.1} parent=1 // pred_check_branch
      %68 = sbr.rel (0) target = $region45
    $region44: #{atmosphere_net_mlp.1} parent=1 // pred_region
      %69 = dma.done [#allocation5], 16384
    $region45: #{atmosphere_net_mlp.1} parent=1 // pred_fallthru
      _
    // Predicated region
    $region46: #{atmosphere_net_mlp.1} parent=1 // pred_check
      _
    $region47: #{atmosphere_net_mlp.1} parent=1 // pred_check_branch
      %71 = sbr.rel (0) target = $region49
    $region48: #{atmosphere_net_mlp.1} parent=1 // pred_region
      %72 = dma.done [#allocation5], 16384
    $region49: #{atmosphere_net_mlp.1} parent=1 // pred_fallthru
      _
    %v73 = vld [vmem:[%s0] sm:$0xff]
    %v74 = vld [vmem:[%s0 + $0x8] sm:$0xff]
    %v75 = vld [vmem:[%s0 + $0x10] sm:$0xff]
    %v76 = vld [vmem:[%s0 + $0x18] sm:$0xff]
    %v77 = vld [vmem:[%s1] sm:$0xff]
    %v78 = vld [vmem:[%s1 + $0x8] sm:$0xff]
    %v79 = vld [vmem:[%s1 + $0x10] sm:$0xff]
    %v80 = vld [vmem:[%s1 + $0x18] sm:$0xff]
    %v81 = vld [vmem:[%s1 + $0x20] sm:$0xff]
    %v82 = vld [vmem:[%s1 + $0x28] sm:$0xff]
    %v83 = vld [vmem:[%s1 + $0x30] sm:$0xff]
    %v84 = vld [vmem:[%s1 + $0x38] sm:$0xff]
    %v85 = vld [vmem:[%s1 + $0x40] sm:$0xff]
    %v86 = vld [vmem:[%s1 + $0x48] sm:$0xff]
    %v87 = vld [vmem:[%s1 + $0x50] sm:$0xff]
    %v88 = vld [vmem:[%s1 + $0x58] sm:$0xff]
    %v89 = vld [vmem:[%s1 + $0x60] sm:$0xff]
    %v90 = vld [vmem:[%s1 + $0x68] sm:$0xff]
    %v91 = vld [vmem:[%s1 + $0x70] sm:$0xff]
    %v92 = vld [vmem:[%s1 + $0x78] sm:$0xff]
    %v93 = vld [vmem:[%s1 + $0x80] sm:$0xff]
    %v94 = vld [vmem:[%s1 + $0x88] sm:$0xff]
    %v95 = vld [vmem:[%s1 + $0x90] sm:$0xff]
    %v96 = vld [vmem:[%s1 + $0x98] sm:$0xff]
    %v97 = vld [vmem:[%s1 + $0xa0] sm:$0xff]
    %v98 = vld [vmem:[%s1 + $0xa8] sm:$0xff]
    %v99 = vld [vmem:[%s1 + $0xb0] sm:$0xff]
    %v100 = vld [vmem:[%s1 + $0xb8] sm:$0xff]
    %v101 = vld [vmem:[%s1 + $0xc0] sm:$0xff]
    %v102 = vld [vmem:[%s1 + $0xc8] sm:$0xff]
    %v103 = vld [vmem:[%s1 + $0xd0] sm:$0xff]
    %v104 = vld [vmem:[%s1 + $0xd8] sm:$0xff]
    %v105 = vld [vmem:[%s1 + $0xe0] sm:$0xff]
    %v106 = vld [vmem:[%s1 + $0xe8] sm:$0xff]
    %v107 = vld [vmem:[%s1 + $0xf0] sm:$0xff]
    %v108 = vld [vmem:[%s1 + $0xf8] sm:$0xff]
    %v109 = vld [vmem:[%s1 + $0x100] sm:$0xff]
    %v110 = vld [vmem:[%s1 + $0x108] sm:$0xff]
    %v111 = vld [vmem:[%s1 + $0x110] sm:$0xff]
    %v112 = vld [vmem:[%s1 + $0x118] sm:$0xff]
    %v113 = vld [vmem:[%s1 + $0x120] sm:$0xff]
    %v114 = vld [vmem:[%s1 + $0x128] sm:$0xff]
    %v115 = vld [vmem:[%s1 + $0x130] sm:$0xff]
    %v116 = vld [vmem:[%s1 + $0x138] sm:$0xff]
    %v117 = vld [vmem:[%s1 + $0x140] sm:$0xff]
    %v118 = vld [vmem:[%s1 + $0x148] sm:$0xff]
    %v119 = vld [vmem:[%s1 + $0x150] sm:$0xff]
    %v120 = vld [vmem:[%s1 + $0x158] sm:$0xff]
    %v121 = vld [vmem:[%s1 + $0x160] sm:$0xff]
    %v122 = vld [vmem:[%s1 + $0x168] sm:$0xff]
    %v123 = vld [vmem:[%s1 + $0x170] sm:$0xff]
    %v124 = vld [vmem:[%s1 + $0x178] sm:$0xff]
    %v125 = vld [vmem:[%s1 + $0x180] sm:$0xff]
    %v126 = vld [vmem:[%s1 + $0x188] sm:$0xff]
    %v127 = vld [vmem:[%s1 + $0x190] sm:$0xff]
    %v128 = vld [vmem:[%s1 + $0x198] sm:$0xff]
    %v129 = vld [vmem:[%s1 + $0x1a0] sm:$0xff]
    %v130 = vld [vmem:[%s1 + $0x1a8] sm:$0xff]
    %v131 = vld [vmem:[%s1 + $0x1b0] sm:$0xff]
    %v132 = vld [vmem:[%s1 + $0x1b8] sm:$0xff]
    %v133 = vld [vmem:[%s1 + $0x1c0] sm:$0xff]
    %v134 = vld [vmem:[%s1 + $0x1c8] sm:$0xff]
    %v135 = vld [vmem:[%s1 + $0x1d0] sm:$0xff]
    %v136 = vld [vmem:[%s1 + $0x1d8] sm:$0xff]
    %v137 = vld [vmem:[%s1 + $0x1e0] sm:$0xff]
    %v138 = vld [vmem:[%s1 + $0x1e8] sm:$0xff]
    %v139 = vld [vmem:[%s1 + $0x1f0] sm:$0xff]
    %v140 = vld [vmem:[%s1 + $0x1f8] sm:$0xff]
    %v141 = vld [vmem:[%s2] sm:$0x3]
    %v143 = vlaneseq
    %v144 = vshrl.u32 %v143, 7
    %v145 = vsub.s32 0, %v144
    %v146 = vrot.slane %v141, %v145
    %v147 = vlaneseq
    %v148 = vshrl.u32 %v147, 7
    %v149 = vsub.s32 1, %v148
    %v150 = vrot.slane %v141, %v149
    %v157 = vunpack.c.l.b16 %v73
    %v158 = vunpack.c.h.b16 %v73
    %v159 = vunpack.c.l.b16 %v74
    %v160 = vunpack.c.h.b16 %v74
    %v161 = vunpack.c.l.b16 %v75
    %v162 = vunpack.c.h.b16 %v75
    %v163 = vunpack.c.l.b16 %v76
    %v164 = vunpack.c.h.b16 %v76
    %v165 = vpack.c.b16 %v161, %v157
    %v166 = vpack.c.b16 %v162, %v158
    %v167 = vpack.c.b16 %v163, %v159
    %v168 = vpack.c.b16 %v164, %v160
    %v237 = vunpack.c.l.b16 %v77
    %v238 = vunpack.c.h.b16 %v77
    %v239 = vunpack.c.l.b16 %v78
    %v240 = vunpack.c.h.b16 %v78
    %v241 = vunpack.c.l.b16 %v79
    %v242 = vunpack.c.h.b16 %v79
    %v243 = vunpack.c.l.b16 %v80
    %v244 = vunpack.c.h.b16 %v80
    %v245 = vunpack.c.l.b16 %v81
    %v246 = vunpack.c.h.b16 %v81
    %v247 = vunpack.c.l.b16 %v82
    %v248 = vunpack.c.h.b16 %v82
    %v249 = vunpack.c.l.b16 %v83
    %v250 = vunpack.c.h.b16 %v83
    %v251 = vunpack.c.l.b16 %v84
    %v252 = vunpack.c.h.b16 %v84
    %v253 = vunpack.c.l.b16 %v85
    %v254 = vunpack.c.h.b16 %v85
    %v255 = vunpack.c.l.b16 %v86
    %v256 = vunpack.c.h.b16 %v86
    %v257 = vunpack.c.l.b16 %v87
    %v258 = vunpack.c.h.b16 %v87
    %v259 = vunpack.c.l.b16 %v88
    %v260 = vunpack.c.h.b16 %v88
    %v261 = vunpack.c.l.b16 %v89
    %v262 = vunpack.c.h.b16 %v89
    %v263 = vunpack.c.l.b16 %v90
    %v264 = vunpack.c.h.b16 %v90
    %v265 = vunpack.c.l.b16 %v91
    %v266 = vunpack.c.h.b16 %v91
    %v267 = vunpack.c.l.b16 %v92
    %v268 = vunpack.c.h.b16 %v92
    %v269 = vunpack.c.l.b16 %v93
    %v270 = vunpack.c.h.b16 %v93
    %v271 = vunpack.c.l.b16 %v94
    %v272 = vunpack.c.h.b16 %v94
    %v273 = vunpack.c.l.b16 %v95
    %v274 = vunpack.c.h.b16 %v95
    %v275 = vunpack.c.l.b16 %v96
    %v276 = vunpack.c.h.b16 %v96
    %v277 = vunpack.c.l.b16 %v97
    %v278 = vunpack.c.h.b16 %v97
    %v279 = vunpack.c.l.b16 %v98
    %v280 = vunpack.c.h.b16 %v98
    %v281 = vunpack.c.l.b16 %v99
    %v282 = vunpack.c.h.b16 %v99
    %v283 = vunpack.c.l.b16 %v100
    %v284 = vunpack.c.h.b16 %v100
    %v285 = vunpack.c.l.b16 %v101
    %v286 = vunpack.c.h.b16 %v101
    %v287 = vunpack.c.l.b16 %v102
    %v288 = vunpack.c.h.b16 %v102
    %v289 = vunpack.c.l.b16 %v103
    %v290 = vunpack.c.h.b16 %v103
    %v291 = vunpack.c.l.b16 %v104
    %v292 = vunpack.c.h.b16 %v104
    %v293 = vunpack.c.l.b16 %v105
    %v294 = vunpack.c.h.b16 %v105
    %v295 = vunpack.c.l.b16 %v106
    %v296 = vunpack.c.h.b16 %v106
    %v297 = vunpack.c.l.b16 %v107
    %v298 = vunpack.c.h.b16 %v107
    %v299 = vunpack.c.l.b16 %v108
    %v300 = vunpack.c.h.b16 %v108
    %v301 = vunpack.c.l.b16 %v109
    %v302 = vunpack.c.h.b16 %v109
    %v303 = vunpack.c.l.b16 %v110
    %v304 = vunpack.c.h.b16 %v110
    %v305 = vunpack.c.l.b16 %v111
    %v306 = vunpack.c.h.b16 %v111
    %v307 = vunpack.c.l.b16 %v112
    %v308 = vunpack.c.h.b16 %v112
    %v309 = vunpack.c.l.b16 %v113
    %v310 = vunpack.c.h.b16 %v113
    %v311 = vunpack.c.l.b16 %v114
    %v312 = vunpack.c.h.b16 %v114
    %v313 = vunpack.c.l.b16 %v115
    %v314 = vunpack.c.h.b16 %v115
    %v315 = vunpack.c.l.b16 %v116
    %v316 = vunpack.c.h.b16 %v116
    %v317 = vunpack.c.l.b16 %v117
    %v318 = vunpack.c.h.b16 %v117
    %v319 = vunpack.c.l.b16 %v118
    %v320 = vunpack.c.h.b16 %v118
    %v321 = vunpack.c.l.b16 %v119
    %v322 = vunpack.c.h.b16 %v119
    %v323 = vunpack.c.l.b16 %v120
    %v324 = vunpack.c.h.b16 %v120
    %v325 = vunpack.c.l.b16 %v121
    %v326 = vunpack.c.h.b16 %v121
    %v327 = vunpack.c.l.b16 %v122
    %v328 = vunpack.c.h.b16 %v122
    %v329 = vunpack.c.l.b16 %v123
    %v330 = vunpack.c.h.b16 %v123
    %v331 = vunpack.c.l.b16 %v124
    %v332 = vunpack.c.h.b16 %v124
    %v333 = vunpack.c.l.b16 %v125
    %v334 = vunpack.c.h.b16 %v125
    %v335 = vunpack.c.l.b16 %v126
    %v336 = vunpack.c.h.b16 %v126
    %v337 = vunpack.c.l.b16 %v127
    %v338 = vunpack.c.h.b16 %v127
    %v339 = vunpack.c.l.b16 %v128
    %v340 = vunpack.c.h.b16 %v128
    %v341 = vunpack.c.l.b16 %v129
    %v342 = vunpack.c.h.b16 %v129
    %v343 = vunpack.c.l.b16 %v130
    %v344 = vunpack.c.h.b16 %v130
    %v345 = vunpack.c.l.b16 %v131
    %v346 = vunpack.c.h.b16 %v131
    %v347 = vunpack.c.l.b16 %v132
    %v348 = vunpack.c.h.b16 %v132
    %v349 = vunpack.c.l.b16 %v133
    %v350 = vunpack.c.h.b16 %v133
    %v351 = vunpack.c.l.b16 %v134
    %v352 = vunpack.c.h.b16 %v134
    %v353 = vunpack.c.l.b16 %v135
    %v354 = vunpack.c.h.b16 %v135
    %v355 = vunpack.c.l.b16 %v136
    %v356 = vunpack.c.h.b16 %v136
    %v357 = vunpack.c.l.b16 %v137
    %v358 = vunpack.c.h.b16 %v137
    %v359 = vunpack.c.l.b16 %v138
    %v360 = vunpack.c.h.b16 %v138
    %v361 = vunpack.c.l.b16 %v139
    %v362 = vunpack.c.h.b16 %v139
    %v363 = vunpack.c.l.b16 %v140
    %v364 = vunpack.c.h.b16 %v140
    %v365 = vpack.c.b16 %v239, %v237
    %v366 = vpack.c.b16 %v240, %v238
    %v367 = vpack.c.b16 %v243, %v241
    %v368 = vpack.c.b16 %v244, %v242
    %v369 = vpack.c.b16 %v247, %v245
    %v370 = vpack.c.b16 %v248, %v246
    %v371 = vpack.c.b16 %v251, %v249
    %v372 = vpack.c.b16 %v252, %v250
    %v373 = vpack.c.b16 %v255, %v253
    %v374 = vpack.c.b16 %v256, %v254
    %v375 = vpack.c.b16 %v259, %v257
    %v376 = vpack.c.b16 %v260, %v258
    %v377 = vpack.c.b16 %v263, %v261
    %v378 = vpack.c.b16 %v264, %v262
    %v379 = vpack.c.b16 %v267, %v265
    %v380 = vpack.c.b16 %v268, %v266
    %v381 = vpack.c.b16 %v271, %v269
    %v382 = vpack.c.b16 %v272, %v270
    %v383 = vpack.c.b16 %v275, %v273
    %v384 = vpack.c.b16 %v276, %v274
    %v385 = vpack.c.b16 %v279, %v277
    %v386 = vpack.c.b16 %v280, %v278
    %v387 = vpack.c.b16 %v283, %v281
    %v388 = vpack.c.b16 %v284, %v282
    %v389 = vpack.c.b16 %v287, %v285
    %v390 = vpack.c.b16 %v288, %v286
    %v391 = vpack.c.b16 %v291, %v289
    %v392 = vpack.c.b16 %v292, %v290
    %v393 = vpack.c.b16 %v295, %v293
    %v394 = vpack.c.b16 %v296, %v294
    %v395 = vpack.c.b16 %v299, %v297
    %v396 = vpack.c.b16 %v300, %v298
    %v397 = vpack.c.b16 %v303, %v301
    %v398 = vpack.c.b16 %v304, %v302
    %v399 = vpack.c.b16 %v307, %v305
    %v400 = vpack.c.b16 %v308, %v306
    %v401 = vpack.c.b16 %v311, %v309
    %v402 = vpack.c.b16 %v312, %v310
    %v403 = vpack.c.b16 %v315, %v313
    %v404 = vpack.c.b16 %v316, %v314
    %v405 = vpack.c.b16 %v319, %v317
    %v406 = vpack.c.b16 %v320, %v318
    %v407 = vpack.c.b16 %v323, %v321
    %v408 = vpack.c.b16 %v324, %v322
    %v409 = vpack.c.b16 %v327, %v325
    %v410 = vpack.c.b16 %v328, %v326
    %v411 = vpack.c.b16 %v331, %v329
    %v412 = vpack.c.b16 %v332, %v330
    %v413 = vpack.c.b16 %v335, %v333
    %v414 = vpack.c.b16 %v336, %v334
    %v415 = vpack.c.b16 %v339, %v337
    %v416 = vpack.c.b16 %v340, %v338
    %v417 = vpack.c.b16 %v343, %v341
    %v418 = vpack.c.b16 %v344, %v342
    %v419 = vpack.c.b16 %v347, %v345
    %v420 = vpack.c.b16 %v348, %v346
    %v421 = vpack.c.b16 %v351, %v349
    %v422 = vpack.c.b16 %v352, %v350
    %v423 = vpack.c.b16 %v355, %v353
    %v424 = vpack.c.b16 %v356, %v354
    %v425 = vpack.c.b16 %v359, %v357
    %v426 = vpack.c.b16 %v360, %v358
    %v427 = vpack.c.b16 %v363, %v361
    %v428 = vpack.c.b16 %v364, %v362
    %493 = vmatprep.subr.bf16.mxu0 %v380
    %494 = vmatpush1.bf16.msra.mxu0 %v379
    %495 = vmatprep.subr.bf16.mxu0 %v378
    %496 = vmatpush1.bf16.msra.mxu0 %v377
    %497 = vmatprep.subr.bf16.mxu0 %v376
    %498 = vmatpush1.bf16.msra.mxu0 %v375
    %499 = vmatprep.subr.bf16.mxu0 %v374
    %500 = vmatpush1.bf16.msra.mxu0 %v373
    %501 = vmatprep.subr.bf16.mxu0 %v372
    %502 = vmatpush1.bf16.msra.mxu0 %v371
    %503 = vmatprep.subr.bf16.mxu0 %v370
    %504 = vmatpush1.bf16.msra.mxu0 %v369
    %505 = vmatprep.subr.bf16.mxu0 %v368
    %506 = vmatpush1.bf16.msra.mxu0 %v367
    %507 = vmatprep.subr.bf16.mxu0 %v366
    %508 = vmatpush1.bf16.msra.mxu0 %v365
    %509 = vmatprep.subr.bf16.mxu0 %v396
    %510 = vmatpush2.bf16.msra.mxu0 %v395
    %511 = vmatprep.subr.bf16.mxu0 %v394
    %512 = vmatpush2.bf16.msra.mxu0 %v393
    %513 = vmatprep.subr.bf16.mxu0 %v392
    %514 = vmatpush2.bf16.msra.mxu0 %v391
    %515 = vmatprep.subr.bf16.mxu0 %v390
    %516 = vmatpush2.bf16.msra.mxu0 %v389
    %517 = vmatprep.subr.bf16.mxu0 %v388
    %518 = vmatpush2.bf16.msra.mxu0 %v387
    %519 = vmatprep.subr.bf16.mxu0 %v386
    %520 = vmatpush2.bf16.msra.mxu0 %v385
    %521 = vmatprep.subr.bf16.mxu0 %v384
    %522 = vmatpush2.bf16.msra.mxu0 %v383
    %523 = vmatprep.subr.bf16.mxu0 %v382
    %524 = vmatpush2.bf16.msra.mxu0 %v381
    %525 = vmatprep.mubr.bf16.mxu0 %v166
    %526 = vmatmul.mubr.bf16.gmra.mxu0 %v165
    %v527 = vpop.f32.mrf.mxu0
    %v528 = vadd.f32 %v146, %v527
    %v529 = vpop.f32.mrf.mxu0
    %v530 = vadd.f32 %v150, %v529
    %v531 = vpop.f32.mrf.mxu0
    %v532 = vadd.f32 %v146, %v531
    %v533 = vpop.f32.mrf.mxu0
    %v534 = vadd.f32 %v150, %v533
    %535 = vdwg.mxu0
    %536 = vmatprep.subr.bf16.mxu0 %v412
    %537 = vmatpush1.bf16.msra.mxu0 %v411
    %538 = vmatprep.subr.bf16.mxu0 %v410
    %539 = vmatpush1.bf16.msra.mxu0 %v409
    %540 = vmatprep.subr.bf16.mxu0 %v408
    %541 = vmatpush1.bf16.msra.mxu0 %v407
    %542 = vmatprep.subr.bf16.mxu0 %v406
    %543 = vmatpush1.bf16.msra.mxu0 %v405
    %544 = vmatprep.subr.bf16.mxu0 %v404
    %545 = vmatpush1.bf16.msra.mxu0 %v403
    %546 = vmatprep.subr.bf16.mxu0 %v402
    %547 = vmatpush1.bf16.msra.mxu0 %v401
    %548 = vmatprep.subr.bf16.mxu0 %v400
    %549 = vmatpush1.bf16.msra.mxu0 %v399
    %550 = vmatprep.subr.bf16.mxu0 %v398
    %551 = vmatpush1.bf16.msra.mxu0 %v397
    %552 = vmatprep.subr.bf16.mxu0 %v428
    %553 = vmatpush2.bf16.msra.mxu0 %v427
    %554 = vmatprep.subr.bf16.mxu0 %v426
    %555 = vmatpush2.bf16.msra.mxu0 %v425
    %556 = vmatprep.subr.bf16.mxu0 %v424
    %557 = vmatpush2.bf16.msra.mxu0 %v423
    %558 = vmatprep.subr.bf16.mxu0 %v422
    %559 = vmatpush2.bf16.msra.mxu0 %v421
    %560 = vmatprep.subr.bf16.mxu0 %v420
    %561 = vmatpush2.bf16.msra.mxu0 %v419
    %562 = vmatprep.subr.bf16.mxu0 %v418
    %563 = vmatpush2.bf16.msra.mxu0 %v417
    %564 = vmatprep.subr.bf16.mxu0 %v416
    %565 = vmatpush2.bf16.msra.mxu0 %v415
    %566 = vmatprep.subr.bf16.mxu0 %v414
    %567 = vmatpush2.bf16.msra.mxu0 %v413
    %568 = vmatprep.mubr.bf16.mxu0 %v168
    %569 = vmatmul.mubr.bf16.gmra.mxu0 %v167
    %v570 = vpop.f32.mrf.mxu0
    %v571 = vadd.f32 %v528, %v570
    %v572 = vpop.f32.mrf.mxu0
    %v573 = vadd.f32 %v530, %v572
    %v574 = vpop.f32.mrf.mxu0
    %v575 = vadd.f32 %v532, %v574
    %v576 = vpop.f32.mrf.mxu0
    %v577 = vadd.f32 %v534, %v576
    %578 = vdwg.mxu0
    %v579 = vmax.f32 %v571, 0.0
    %v580 = vmax.f32 %v573, 0.0
    %v581 = vmax.f32 %v575, 0.0
    %v582 = vmax.f32 %v577, 0.0
    %v583 = vpack.c.bf16 %v581, %v579
    %v584 = vpack.c.bf16 %v582, %v580
    %v585 = vld [vmem:[#allocation2] sm:$0xff]
    %v586 = vld [vmem:[#allocation2 + $0x8] sm:$0xff]
    %v587 = vld [vmem:[#allocation2 + $0x10] sm:$0xff]
    %v588 = vld [vmem:[#allocation2 + $0x18] sm:$0xff]
    %v589 = vld [vmem:[#allocation2 + $0x20] sm:$0xff]
    %v590 = vld [vmem:[#allocation2 + $0x28] sm:$0xff]
    %v591 = vld [vmem:[#allocation2 + $0x30] sm:$0xff]
    %v592 = vld [vmem:[#allocation2 + $0x38] sm:$0xff]
    %v593 = vld [vmem:[#allocation2 + $0x40] sm:$0xff]
    %v594 = vld [vmem:[#allocation2 + $0x48] sm:$0xff]
    %v595 = vld [vmem:[#allocation2 + $0x50] sm:$0xff]
    %v596 = vld [vmem:[#allocation2 + $0x58] sm:$0xff]
    %v597 = vld [vmem:[#allocation2 + $0x60] sm:$0xff]
    %v598 = vld [vmem:[#allocation2 + $0x68] sm:$0xff]
    %v599 = vld [vmem:[#allocation2 + $0x70] sm:$0xff]
    %v600 = vld [vmem:[#allocation2 + $0x78] sm:$0xff]
    %v601 = vld [vmem:[#allocation2 + $0x80] sm:$0xff]
    %v602 = vld [vmem:[#allocation2 + $0x88] sm:$0xff]
    %v603 = vld [vmem:[#allocation2 + $0x90] sm:$0xff]
    %v604 = vld [vmem:[#allocation2 + $0x98] sm:$0xff]
    %v605 = vld [vmem:[#allocation2 + $0xa0] sm:$0xff]
    %v606 = vld [vmem:[#allocation2 + $0xa8] sm:$0xff]
    %v607 = vld [vmem:[#allocation2 + $0xb0] sm:$0xff]
    %v608 = vld [vmem:[#allocation2 + $0xb8] sm:$0xff]
    %v609 = vld [vmem:[#allocation2 + $0xc0] sm:$0xff]
    %v610 = vld [vmem:[#allocation2 + $0xc8] sm:$0xff]
    %v611 = vld [vmem:[#allocation2 + $0xd0] sm:$0xff]
    %v612 = vld [vmem:[#allocation2 + $0xd8] sm:$0xff]
    %v613 = vld [vmem:[#allocation2 + $0xe0] sm:$0xff]
    %v614 = vld [vmem:[#allocation2 + $0xe8] sm:$0xff]
    %v615 = vld [vmem:[#allocation2 + $0xf0] sm:$0xff]
    %v616 = vld [vmem:[#allocation2 + $0xf8] sm:$0xff]
    %v617 = vld [vmem:[#allocation2 + $0x100] sm:$0xff]
    %v618 = vld [vmem:[#allocation2 + $0x108] sm:$0xff]
    %v619 = vld [vmem:[#allocation2 + $0x110] sm:$0xff]
    %v620 = vld [vmem:[#allocation2 + $0x118] sm:$0xff]
    %v621 = vld [vmem:[#allocation2 + $0x120] sm:$0xff]
    %v622 = vld [vmem:[#allocation2 + $0x128] sm:$0xff]
    %v623 = vld [vmem:[#allocation2 + $0x130] sm:$0xff]
    %v624 = vld [vmem:[#allocation2 + $0x138] sm:$0xff]
    %v625 = vld [vmem:[#allocation2 + $0x140] sm:$0xff]
    %v626 = vld [vmem:[#allocation2 + $0x148] sm:$0xff]
    %v627 = vld [vmem:[#allocation2 + $0x150] sm:$0xff]
    %v628 = vld [vmem:[#allocation2 + $0x158] sm:$0xff]
    %v629 = vld [vmem:[#allocation2 + $0x160] sm:$0xff]
    %v630 = vld [vmem:[#allocation2 + $0x168] sm:$0xff]
    %v631 = vld [vmem:[#allocation2 + $0x170] sm:$0xff]
    %v632 = vld [vmem:[#allocation2 + $0x178] sm:$0xff]
    %v633 = vld [vmem:[#allocation2 + $0x180] sm:$0xff]
    %v634 = vld [vmem:[#allocation2 + $0x188] sm:$0xff]
    %v635 = vld [vmem:[#allocation2 + $0x190] sm:$0xff]
    %v636 = vld [vmem:[#allocation2 + $0x198] sm:$0xff]
    %v637 = vld [vmem:[#allocation2 + $0x1a0] sm:$0xff]
    %v638 = vld [vmem:[#allocation2 + $0x1a8] sm:$0xff]
    %v639 = vld [vmem:[#allocation2 + $0x1b0] sm:$0xff]
    %v640 = vld [vmem:[#allocation2 + $0x1b8] sm:$0xff]
    %v641 = vld [vmem:[#allocation2 + $0x1c0] sm:$0xff]
    %v642 = vld [vmem:[#allocation2 + $0x1c8] sm:$0xff]
    %v643 = vld [vmem:[#allocation2 + $0x1d0] sm:$0xff]
    %v644 = vld [vmem:[#allocation2 + $0x1d8] sm:$0xff]
    %v645 = vld [vmem:[#allocation2 + $0x1e0] sm:$0xff]
    %v646 = vld [vmem:[#allocation2 + $0x1e8] sm:$0xff]
    %v647 = vld [vmem:[#allocation2 + $0x1f0] sm:$0xff]
    %v648 = vld [vmem:[#allocation2 + $0x1f8] sm:$0xff]
    %v649 = vld [vmem:[%s4] sm:$0xf]
    %v651 = vlaneseq
    %v652 = vshrl.u32 %v651, 7
    %v653 = vsub.s32 0, %v652
    %v654 = vrot.slane %v649, %v653
    %v655 = vlaneseq
    %v656 = vshrl.u32 %v655, 7
    %v657 = vsub.s32 1, %v656
    %v658 = vrot.slane %v649, %v657
    %v659 = vlaneseq
    %v660 = vshrl.u32 %v659, 7
    %v661 = vsub.s32 2, %v660
    %v662 = vrot.slane %v649, %v661
    %v663 = vlaneseq
    %v664 = vshrl.u32 %v663, 7
    %v665 = vsub.s32 3, %v664
    %v666 = vrot.slane %v649, %v665
    %v735 = vunpack.c.l.b16 %v585
    %v736 = vunpack.c.h.b16 %v585
    %v737 = vunpack.c.l.b16 %v586
    %v738 = vunpack.c.h.b16 %v586
    %v739 = vunpack.c.l.b16 %v587
    %v740 = vunpack.c.h.b16 %v587
    %v741 = vunpack.c.l.b16 %v588
    %v742 = vunpack.c.h.b16 %v588
    %v743 = vunpack.c.l.b16 %v589
    %v744 = vunpack.c.h.b16 %v589
    %v745 = vunpack.c.l.b16 %v590
    %v746 = vunpack.c.h.b16 %v590
    %v747 = vunpack.c.l.b16 %v591
    %v748 = vunpack.c.h.b16 %v591
    %v749 = vunpack.c.l.b16 %v592
    %v750 = vunpack.c.h.b16 %v592
    %v751 = vunpack.c.l.b16 %v593
    %v752 = vunpack.c.h.b16 %v593
    %v753 = vunpack.c.l.b16 %v594
    %v754 = vunpack.c.h.b16 %v594
    %v755 = vunpack.c.l.b16 %v595
    %v756 = vunpack.c.h.b16 %v595
    %v757 = vunpack.c.l.b16 %v596
    %v758 = vunpack.c.h.b16 %v596
    %v759 = vunpack.c.l.b16 %v597
    %v760 = vunpack.c.h.b16 %v597
    %v761 = vunpack.c.l.b16 %v598
    %v762 = vunpack.c.h.b16 %v598
    %v763 = vunpack.c.l.b16 %v599
    %v764 = vunpack.c.h.b16 %v599
    %v765 = vunpack.c.l.b16 %v600
    %v766 = vunpack.c.h.b16 %v600
    %v767 = vunpack.c.l.b16 %v601
    %v768 = vunpack.c.h.b16 %v601
    %v769 = vunpack.c.l.b16 %v602
    %v770 = vunpack.c.h.b16 %v602
    %v771 = vunpack.c.l.b16 %v603
    %v772 = vunpack.c.h.b16 %v603
    %v773 = vunpack.c.l.b16 %v604
    %v774 = vunpack.c.h.b16 %v604
    %v775 = vunpack.c.l.b16 %v605
    %v776 = vunpack.c.h.b16 %v605
    %v777 = vunpack.c.l.b16 %v606
    %v778 = vunpack.c.h.b16 %v606
    %v779 = vunpack.c.l.b16 %v607
    %v780 = vunpack.c.h.b16 %v607
    %v781 = vunpack.c.l.b16 %v608
    %v782 = vunpack.c.h.b16 %v608
    %v783 = vunpack.c.l.b16 %v609
    %v784 = vunpack.c.h.b16 %v609
    %v785 = vunpack.c.l.b16 %v610
    %v786 = vunpack.c.h.b16 %v610
    %v787 = vunpack.c.l.b16 %v611
    %v788 = vunpack.c.h.b16 %v611
    %v789 = vunpack.c.l.b16 %v612
    %v790 = vunpack.c.h.b16 %v612
    %v791 = vunpack.c.l.b16 %v613
    %v792 = vunpack.c.h.b16 %v613
    %v793 = vunpack.c.l.b16 %v614
    %v794 = vunpack.c.h.b16 %v614
    %v795 = vunpack.c.l.b16 %v615
    %v796 = vunpack.c.h.b16 %v615
    %v797 = vunpack.c.l.b16 %v616
    %v798 = vunpack.c.h.b16 %v616
    %v799 = vunpack.c.l.b16 %v617
    %v800 = vunpack.c.h.b16 %v617
    %v801 = vunpack.c.l.b16 %v618
    %v802 = vunpack.c.h.b16 %v618
    %v803 = vunpack.c.l.b16 %v619
    %v804 = vunpack.c.h.b16 %v619
    %v805 = vunpack.c.l.b16 %v620
    %v806 = vunpack.c.h.b16 %v620
    %v807 = vunpack.c.l.b16 %v621
    %v808 = vunpack.c.h.b16 %v621
    %v809 = vunpack.c.l.b16 %v622
    %v810 = vunpack.c.h.b16 %v622
    %v811 = vunpack.c.l.b16 %v623
    %v812 = vunpack.c.h.b16 %v623
    %v813 = vunpack.c.l.b16 %v624
    %v814 = vunpack.c.h.b16 %v624
    %v815 = vunpack.c.l.b16 %v625
    %v816 = vunpack.c.h.b16 %v625
    %v817 = vunpack.c.l.b16 %v626
    %v818 = vunpack.c.h.b16 %v626
    %v819 = vunpack.c.l.b16 %v627
    %v820 = vunpack.c.h.b16 %v627
    %v821 = vunpack.c.l.b16 %v628
    %v822 = vunpack.c.h.b16 %v628
    %v823 = vunpack.c.l.b16 %v629
    %v824 = vunpack.c.h.b16 %v629
    %v825 = vunpack.c.l.b16 %v630
    %v826 = vunpack.c.h.b16 %v630
    %v827 = vunpack.c.l.b16 %v631
    %v828 = vunpack.c.h.b16 %v631
    %v829 = vunpack.c.l.b16 %v632
    %v830 = vunpack.c.h.b16 %v632
    %v831 = vunpack.c.l.b16 %v633
    %v832 = vunpack.c.h.b16 %v633
    %v833 = vunpack.c.l.b16 %v634
    %v834 = vunpack.c.h.b16 %v634
    %v835 = vunpack.c.l.b16 %v635
    %v836 = vunpack.c.h.b16 %v635
    %v837 = vunpack.c.l.b16 %v636
    %v838 = vunpack.c.h.b16 %v636
    %v839 = vunpack.c.l.b16 %v637
    %v840 = vunpack.c.h.b16 %v637
    %v841 = vunpack.c.l.b16 %v638
    %v842 = vunpack.c.h.b16 %v638
    %v843 = vunpack.c.l.b16 %v639
    %v844 = vunpack.c.h.b16 %v639
    %v845 = vunpack.c.l.b16 %v640
    %v846 = vunpack.c.h.b16 %v640
    %v847 = vunpack.c.l.b16 %v641
    %v848 = vunpack.c.h.b16 %v641
    %v849 = vunpack.c.l.b16 %v642
    %v850 = vunpack.c.h.b16 %v642
    %v851 = vunpack.c.l.b16 %v643
    %v852 = vunpack.c.h.b16 %v643
    %v853 = vunpack.c.l.b16 %v644
    %v854 = vunpack.c.h.b16 %v644
    %v855 = vunpack.c.l.b16 %v645
    %v856 = vunpack.c.h.b16 %v645
    %v857 = vunpack.c.l.b16 %v646
    %v858 = vunpack.c.h.b16 %v646
    %v859 = vunpack.c.l.b16 %v647
    %v860 = vunpack.c.h.b16 %v647
    %v861 = vunpack.c.l.b16 %v648
    %v862 = vunpack.c.h.b16 %v648
    %v863 = vpack.c.b16 %v739, %v735
    %v864 = vpack.c.b16 %v740, %v736
    %v865 = vpack.c.b16 %v741, %v737
    %v866 = vpack.c.b16 %v742, %v738
    %v867 = vpack.c.b16 %v747, %v743
    %v868 = vpack.c.b16 %v748, %v744
    %v869 = vpack.c.b16 %v749, %v745
    %v870 = vpack.c.b16 %v750, %v746
    %v871 = vpack.c.b16 %v755, %v751
    %v872 = vpack.c.b16 %v756, %v752
    %v873 = vpack.c.b16 %v757, %v753
    %v874 = vpack.c.b16 %v758, %v754
    %v875 = vpack.c.b16 %v763, %v759
    %v876 = vpack.c.b16 %v764, %v760
    %v877 = vpack.c.b16 %v765, %v761
    %v878 = vpack.c.b16 %v766, %v762
    %v879 = vpack.c.b16 %v771, %v767
    %v880 = vpack.c.b16 %v772, %v768
    %v881 = vpack.c.b16 %v773, %v769
    %v882 = vpack.c.b16 %v774, %v770
    %v883 = vpack.c.b16 %v779, %v775
    %v884 = vpack.c.b16 %v780, %v776
    %v885 = vpack.c.b16 %v781, %v777
    %v886 = vpack.c.b16 %v782, %v778
    %v887 = vpack.c.b16 %v787, %v783
    %v888 = vpack.c.b16 %v788, %v784
    %v889 = vpack.c.b16 %v789, %v785
    %v890 = vpack.c.b16 %v790, %v786
    %v891 = vpack.c.b16 %v795, %v791
    %v892 = vpack.c.b16 %v796, %v792
    %v893 = vpack.c.b16 %v797, %v793
    %v894 = vpack.c.b16 %v798, %v794
    %v895 = vpack.c.b16 %v803, %v799
    %v896 = vpack.c.b16 %v804, %v800
    %v897 = vpack.c.b16 %v805, %v801
    %v898 = vpack.c.b16 %v806, %v802
    %v899 = vpack.c.b16 %v811, %v807
    %v900 = vpack.c.b16 %v812, %v808
    %v901 = vpack.c.b16 %v813, %v809
    %v902 = vpack.c.b16 %v814, %v810
    %v903 = vpack.c.b16 %v819, %v815
    %v904 = vpack.c.b16 %v820, %v816
    %v905 = vpack.c.b16 %v821, %v817
    %v906 = vpack.c.b16 %v822, %v818
    %v907 = vpack.c.b16 %v827, %v823
    %v908 = vpack.c.b16 %v828, %v824
    %v909 = vpack.c.b16 %v829, %v825
    %v910 = vpack.c.b16 %v830, %v826
    %v911 = vpack.c.b16 %v835, %v831
    %v912 = vpack.c.b16 %v836, %v832
    %v913 = vpack.c.b16 %v837, %v833
    %v914 = vpack.c.b16 %v838, %v834
    %v915 = vpack.c.b16 %v843, %v839
    %v916 = vpack.c.b16 %v844, %v840
    %v917 = vpack.c.b16 %v845, %v841
    %v918 = vpack.c.b16 %v846, %v842
    %v919 = vpack.c.b16 %v851, %v847
    %v920 = vpack.c.b16 %v852, %v848
    %v921 = vpack.c.b16 %v853, %v849
    %v922 = vpack.c.b16 %v854, %v850
    %v923 = vpack.c.b16 %v859, %v855
    %v924 = vpack.c.b16 %v860, %v856
    %v925 = vpack.c.b16 %v861, %v857
    %v926 = vpack.c.b16 %v862, %v858
    %991 = vmatprep.subr.bf16.mxu0 %v892
    %992 = vmatpush1.bf16.msra.mxu0 %v891
    %993 = vmatprep.subr.bf16.mxu0 %v888
    %994 = vmatpush1.bf16.msra.mxu0 %v887
    %995 = vmatprep.subr.bf16.mxu0 %v884
    %996 = vmatpush1.bf16.msra.mxu0 %v883
    %997 = vmatprep.subr.bf16.mxu0 %v880
    %998 = vmatpush1.bf16.msra.mxu0 %v879
    %999 = vmatprep.subr.bf16.mxu0 %v876
    %1000 = vmatpush1.bf16.msra.mxu0 %v875
    %1001 = vmatprep.subr.bf16.mxu0 %v872
    %1002 = vmatpush1.bf16.msra.mxu0 %v871
    %1003 = vmatprep.subr.bf16.mxu0 %v868
    %1004 = vmatpush1.bf16.msra.mxu0 %v867
    %1005 = vmatprep.subr.bf16.mxu0 %v864
    %1006 = vmatpush1.bf16.msra.mxu0 %v863
    %1007 = vmatprep.subr.bf16.mxu0 %v924
    %1008 = vmatpush2.bf16.msra.mxu0 %v923
    %1009 = vmatprep.subr.bf16.mxu0 %v920
    %1010 = vmatpush2.bf16.msra.mxu0 %v919
    %1011 = vmatprep.subr.bf16.mxu0 %v916
    %1012 = vmatpush2.bf16.msra.mxu0 %v915
    %1013 = vmatprep.subr.bf16.mxu0 %v912
    %1014 = vmatpush2.bf16.msra.mxu0 %v911
    %1015 = vmatprep.subr.bf16.mxu0 %v908
    %1016 = vmatpush2.bf16.msra.mxu0 %v907
    %1017 = vmatprep.subr.bf16.mxu0 %v904
    %1018 = vmatpush2.bf16.msra.mxu0 %v903
    %1019 = vmatprep.subr.bf16.mxu0 %v900
    %1020 = vmatpush2.bf16.msra.mxu0 %v899
    %1021 = vmatprep.subr.bf16.mxu0 %v896
    %1022 = vmatpush2.bf16.msra.mxu0 %v895
    %1023 = vmatprep.mubr.bf16.mxu0 %v584
    %1024 = vmatmul.mubr.bf16.gmra.mxu0 %v583
    %v1025 = vpop.f32.mrf.mxu0
    %v1026 = vadd.f32 %v654, %v1025
    %v1027 = vpop.f32.mrf.mxu0
    %v1028 = vadd.f32 %v658, %v1027
    %v1029 = vpop.f32.mrf.mxu0
    %v1030 = vadd.f32 %v654, %v1029
    %v1031 = vpop.f32.mrf.mxu0
    %v1032 = vadd.f32 %v658, %v1031
    %1033 = vdwg.mxu0
    %1034 = vmatprep.subr.bf16.mxu0 %v894
    %1035 = vmatpush1.bf16.msra.mxu0 %v893
    %1036 = vmatprep.subr.bf16.mxu0 %v890
    %1037 = vmatpush1.bf16.msra.mxu0 %v889
    %1038 = vmatprep.subr.bf16.mxu0 %v886
    %1039 = vmatpush1.bf16.msra.mxu0 %v885
    %1040 = vmatprep.subr.bf16.mxu0 %v882
    %1041 = vmatpush1.bf16.msra.mxu0 %v881
    %1042 = vmatprep.subr.bf16.mxu0 %v878
    %1043 = vmatpush1.bf16.msra.mxu0 %v877
    %1044 = vmatprep.subr.bf16.mxu0 %v874
    %1045 = vmatpush1.bf16.msra.mxu0 %v873
    %1046 = vmatprep.subr.bf16.mxu0 %v870
    %1047 = vmatpush1.bf16.msra.mxu0 %v869
    %1048 = vmatprep.subr.bf16.mxu0 %v866
    %1049 = vmatpush1.bf16.msra.mxu0 %v865
    %1050 = vmatprep.subr.bf16.mxu0 %v926
    %1051 = vmatpush2.bf16.msra.mxu0 %v925
    %1052 = vmatprep.subr.bf16.mxu0 %v922
    %1053 = vmatpush2.bf16.msra.mxu0 %v921
    %1054 = vmatprep.subr.bf16.mxu0 %v918
    %1055 = vmatpush2.bf16.msra.mxu0 %v917
    %1056 = vmatprep.subr.bf16.mxu0 %v914
    %1057 = vmatpush2.bf16.msra.mxu0 %v913
    %1058 = vmatprep.subr.bf16.mxu0 %v910
    %1059 = vmatpush2.bf16.msra.mxu0 %v909
    %1060 = vmatprep.subr.bf16.mxu0 %v906
    %1061 = vmatpush2.bf16.msra.mxu0 %v905
    %1062 = vmatprep.subr.bf16.mxu0 %v902
    %1063 = vmatpush2.bf16.msra.mxu0 %v901
    %1064 = vmatprep.subr.bf16.mxu0 %v898
    %1065 = vmatpush2.bf16.msra.mxu0 %v897
    %1066 = vmatprep.mubr.bf16.mxu0 %v584
    %1067 = vmatmul.mubr.bf16.gmra.mxu0 %v583
    %v1068 = vpop.f32.mrf.mxu0
    %v1069 = vadd.f32 %v662, %v1068
    %v1070 = vpop.f32.mrf.mxu0
    %v1071 = vadd.f32 %v666, %v1070
    %v1072 = vpop.f32.mrf.mxu0
    %v1073 = vadd.f32 %v662, %v1072
    %v1074 = vpop.f32.mrf.mxu0
    %v1075 = vadd.f32 %v666, %v1074
    %1076 = vdwg.mxu0
    %v1077 = vmax.f32 %v1026, 0.0
    %v1078 = vmax.f32 %v1028, 0.0
    %v1079 = vmax.f32 %v1069, 0.0
    %v1080 = vmax.f32 %v1071, 0.0
    %v1081 = vmax.f32 %v1030, 0.0
    %v1082 = vmax.f32 %v1032, 0.0
    %v1083 = vmax.f32 %v1073, 0.0
    %v1084 = vmax.f32 %v1075, 0.0
    %v1085 = vpack.c.bf16 %v1081, %v1077
    %v1086 = vpack.c.bf16 %v1082, %v1078
    %v1087 = vpack.c.bf16 %v1083, %v1079
    %v1088 = vpack.c.bf16 %v1084, %v1080
    %v1089 = vld [vmem:[#allocation4] sm:$0xff]
    %v1090 = vld [vmem:[#allocation4 + $0x8] sm:$0xff]
    %v1091 = vld [vmem:[#allocation4 + $0x10] sm:$0xff]
    %v1092 = vld [vmem:[#allocation4 + $0x18] sm:$0xff]
    %v1093 = vld [vmem:[#allocation4 + $0x20] sm:$0xff]
    %v1094 = vld [vmem:[#allocation4 + $0x28] sm:$0xff]
    %v1095 = vld [vmem:[#allocation4 + $0x30] sm:$0xff]
    %v1096 = vld [vmem:[#allocation4 + $0x38] sm:$0xff]
    %v1097 = vld [vmem:[#allocation4 + $0x40] sm:$0xff]
    %v1098 = vld [vmem:[#allocation4 + $0x48] sm:$0xff]
    %v1099 = vld [vmem:[#allocation4 + $0x50] sm:$0xff]
    %v1100 = vld [vmem:[#allocation4 + $0x58] sm:$0xff]
    %v1101 = vld [vmem:[#allocation4 + $0x60] sm:$0xff]
    %v1102 = vld [vmem:[#allocation4 + $0x68] sm:$0xff]
    %v1103 = vld [vmem:[#allocation4 + $0x70] sm:$0xff]
    %v1104 = vld [vmem:[#allocation4 + $0x78] sm:$0xff]
    %v1105 = vld [vmem:[#allocation4 + $0x80] sm:$0xff]
    %v1106 = vld [vmem:[#allocation4 + $0x88] sm:$0xff]
    %v1107 = vld [vmem:[#allocation4 + $0x90] sm:$0xff]
    %v1108 = vld [vmem:[#allocation4 + $0x98] sm:$0xff]
    %v1109 = vld [vmem:[#allocation4 + $0xa0] sm:$0xff]
    %v1110 = vld [vmem:[#allocation4 + $0xa8] sm:$0xff]
    %v1111 = vld [vmem:[#allocation4 + $0xb0] sm:$0xff]
    %v1112 = vld [vmem:[#allocation4 + $0xb8] sm:$0xff]
    %v1113 = vld [vmem:[#allocation4 + $0xc0] sm:$0xff]
    %v1114 = vld [vmem:[#allocation4 + $0xc8] sm:$0xff]
    %v1115 = vld [vmem:[#allocation4 + $0xd0] sm:$0xff]
    %v1116 = vld [vmem:[#allocation4 + $0xd8] sm:$0xff]
    %v1117 = vld [vmem:[#allocation4 + $0xe0] sm:$0xff]
    %v1118 = vld [vmem:[#allocation4 + $0xe8] sm:$0xff]
    %v1119 = vld [vmem:[#allocation4 + $0xf0] sm:$0xff]
    %v1120 = vld [vmem:[#allocation4 + $0xf8] sm:$0xff]
    %v1121 = vld [vmem:[#allocation4 + $0x100] sm:$0xff]
    %v1122 = vld [vmem:[#allocation4 + $0x108] sm:$0xff]
    %v1123 = vld [vmem:[#allocation4 + $0x110] sm:$0xff]
    %v1124 = vld [vmem:[#allocation4 + $0x118] sm:$0xff]
    %v1125 = vld [vmem:[#allocation4 + $0x120] sm:$0xff]
    %v1126 = vld [vmem:[#allocation4 + $0x128] sm:$0xff]
    %v1127 = vld [vmem:[#allocation4 + $0x130] sm:$0xff]
    %v1128 = vld [vmem:[#allocation4 + $0x138] sm:$0xff]
    %v1129 = vld [vmem:[#allocation4 + $0x140] sm:$0xff]
    %v1130 = vld [vmem:[#allocation4 + $0x148] sm:$0xff]
    %v1131 = vld [vmem:[#allocation4 + $0x150] sm:$0xff]
    %v1132 = vld [vmem:[#allocation4 + $0x158] sm:$0xff]
    %v1133 = vld [vmem:[#allocation4 + $0x160] sm:$0xff]
    %v1134 = vld [vmem:[#allocation4 + $0x168] sm:$0xff]
    %v1135 = vld [vmem:[#allocation4 + $0x170] sm:$0xff]
    %v1136 = vld [vmem:[#allocation4 + $0x178] sm:$0xff]
    %v1137 = vld [vmem:[#allocation4 + $0x180] sm:$0xff]
    %v1138 = vld [vmem:[#allocation4 + $0x188] sm:$0xff]
    %v1139 = vld [vmem:[#allocation4 + $0x190] sm:$0xff]
    %v1140 = vld [vmem:[#allocation4 + $0x198] sm:$0xff]
    %v1141 = vld [vmem:[#allocation4 + $0x1a0] sm:$0xff]
    %v1142 = vld [vmem:[#allocation4 + $0x1a8] sm:$0xff]
    %v1143 = vld [vmem:[#allocation4 + $0x1b0] sm:$0xff]
    %v1144 = vld [vmem:[#allocation4 + $0x1b8] sm:$0xff]
    %v1145 = vld [vmem:[#allocation4 + $0x1c0] sm:$0xff]
    %v1146 = vld [vmem:[#allocation4 + $0x1c8] sm:$0xff]
    %v1147 = vld [vmem:[#allocation4 + $0x1d0] sm:$0xff]
    %v1148 = vld [vmem:[#allocation4 + $0x1d8] sm:$0xff]
    %v1149 = vld [vmem:[#allocation4 + $0x1e0] sm:$0xff]
    %v1150 = vld [vmem:[#allocation4 + $0x1e8] sm:$0xff]
    %v1151 = vld [vmem:[#allocation4 + $0x1f0] sm:$0xff]
    %v1152 = vld [vmem:[#allocation4 + $0x1f8] sm:$0xff]
    %v1153 = vld [vmem:[#allocation4 + $0x200] sm:$0xff]
    %v1154 = vld [vmem:[#allocation4 + $0x208] sm:$0xff]
    %v1155 = vld [vmem:[#allocation4 + $0x210] sm:$0xff]
    %v1156 = vld [vmem:[#allocation4 + $0x218] sm:$0xff]
    %v1157 = vld [vmem:[#allocation4 + $0x220] sm:$0xff]
    %v1158 = vld [vmem:[#allocation4 + $0x228] sm:$0xff]
    %v1159 = vld [vmem:[#allocation4 + $0x230] sm:$0xff]
    %v1160 = vld [vmem:[#allocation4 + $0x238] sm:$0xff]
    %v1161 = vld [vmem:[#allocation4 + $0x240] sm:$0xff]
    %v1162 = vld [vmem:[#allocation4 + $0x248] sm:$0xff]
    %v1163 = vld [vmem:[#allocation4 + $0x250] sm:$0xff]
    %v1164 = vld [vmem:[#allocation4 + $0x258] sm:$0xff]
    %v1165 = vld [vmem:[#allocation4 + $0x260] sm:$0xff]
    %v1166 = vld [vmem:[#allocation4 + $0x268] sm:$0xff]
    %v1167 = vld [vmem:[#allocation4 + $0x270] sm:$0xff]
    %v1168 = vld [vmem:[#allocation4 + $0x278] sm:$0xff]
    %v1169 = vld [vmem:[#allocation4 + $0x280] sm:$0xff]
    %v1170 = vld [vmem:[#allocation4 + $0x288] sm:$0xff]
    %v1171 = vld [vmem:[#allocation4 + $0x290] sm:$0xff]
    %v1172 = vld [vmem:[#allocation4 + $0x298] sm:$0xff]
    %v1173 = vld [vmem:[#allocation4 + $0x2a0] sm:$0xff]
    %v1174 = vld [vmem:[#allocation4 + $0x2a8] sm:$0xff]
    %v1175 = vld [vmem:[#allocation4 + $0x2b0] sm:$0xff]
    %v1176 = vld [vmem:[#allocation4 + $0x2b8] sm:$0xff]
    %v1177 = vld [vmem:[#allocation4 + $0x2c0] sm:$0xff]
    %v1178 = vld [vmem:[#allocation4 + $0x2c8] sm:$0xff]
    %v1179 = vld [vmem:[#allocation4 + $0x2d0] sm:$0xff]
    %v1180 = vld [vmem:[#allocation4 + $0x2d8] sm:$0xff]
    %v1181 = vld [vmem:[#allocation4 + $0x2e0] sm:$0xff]
    %v1182 = vld [vmem:[#allocation4 + $0x2e8] sm:$0xff]
    %v1183 = vld [vmem:[#allocation4 + $0x2f0] sm:$0xff]
    %v1184 = vld [vmem:[#allocation4 + $0x2f8] sm:$0xff]
    %v1185 = vld [vmem:[#allocation4 + $0x300] sm:$0xff]
    %v1186 = vld [vmem:[#allocation4 + $0x308] sm:$0xff]
    %v1187 = vld [vmem:[#allocation4 + $0x310] sm:$0xff]
    %v1188 = vld [vmem:[#allocation4 + $0x318] sm:$0xff]
    %v1189 = vld [vmem:[#allocation4 + $0x320] sm:$0xff]
    %v1190 = vld [vmem:[#allocation4 + $0x328] sm:$0xff]
    %v1191 = vld [vmem:[#allocation4 + $0x330] sm:$0xff]
    %v1192 = vld [vmem:[#allocation4 + $0x338] sm:$0xff]
    %v1193 = vld [vmem:[#allocation4 + $0x340] sm:$0xff]
    %v1194 = vld [vmem:[#allocation4 + $0x348] sm:$0xff]
    %v1195 = vld [vmem:[#allocation4 + $0x350] sm:$0xff]
    %v1196 = vld [vmem:[#allocation4 + $0x358] sm:$0xff]
    %v1197 = vld [vmem:[#allocation4 + $0x360] sm:$0xff]
    %v1198 = vld [vmem:[#allocation4 + $0x368] sm:$0xff]
    %v1199 = vld [vmem:[#allocation4 + $0x370] sm:$0xff]
    %v1200 = vld [vmem:[#allocation4 + $0x378] sm:$0xff]
    %v1201 = vld [vmem:[#allocation4 + $0x380] sm:$0xff]
    %v1202 = vld [vmem:[#allocation4 + $0x388] sm:$0xff]
    %v1203 = vld [vmem:[#allocation4 + $0x390] sm:$0xff]
    %v1204 = vld [vmem:[#allocation4 + $0x398] sm:$0xff]
    %v1205 = vld [vmem:[#allocation4 + $0x3a0] sm:$0xff]
    %v1206 = vld [vmem:[#allocation4 + $0x3a8] sm:$0xff]
    %v1207 = vld [vmem:[#allocation4 + $0x3b0] sm:$0xff]
    %v1208 = vld [vmem:[#allocation4 + $0x3b8] sm:$0xff]
    %v1209 = vld [vmem:[#allocation4 + $0x3c0] sm:$0xff]
    %v1210 = vld [vmem:[#allocation4 + $0x3c8] sm:$0xff]
    %v1211 = vld [vmem:[#allocation4 + $0x3d0] sm:$0xff]
    %v1212 = vld [vmem:[#allocation4 + $0x3d8] sm:$0xff]
    %v1213 = vld [vmem:[#allocation4 + $0x3e0] sm:$0xff]
    %v1214 = vld [vmem:[#allocation4 + $0x3e8] sm:$0xff]
    %v1215 = vld [vmem:[#allocation4 + $0x3f0] sm:$0xff]
    %v1216 = vld [vmem:[#allocation4 + $0x3f8] sm:$0xff]
    %v1217 = vld [vmem:[%s6] sm:$0xf]
    %v1219 = vlaneseq
    %v1220 = vshrl.u32 %v1219, 7
    %v1221 = vsub.s32 0, %v1220
    %v1222 = vrot.slane %v1217, %v1221
    %v1223 = vlaneseq
    %v1224 = vshrl.u32 %v1223, 7
    %v1225 = vsub.s32 1, %v1224
    %v1226 = vrot.slane %v1217, %v1225
    %v1227 = vlaneseq
    %v1228 = vshrl.u32 %v1227, 7
    %v1229 = vsub.s32 2, %v1228
    %v1230 = vrot.slane %v1217, %v1229
    %v1231 = vlaneseq
    %v1232 = vshrl.u32 %v1231, 7
    %v1233 = vsub.s32 3, %v1232
    %v1234 = vrot.slane %v1217, %v1233
    %v1367 = vunpack.c.l.b16 %v1089
    %v1368 = vunpack.c.h.b16 %v1089
    %v1369 = vunpack.c.l.b16 %v1090
    %v1370 = vunpack.c.h.b16 %v1090
    %v1371 = vunpack.c.l.b16 %v1091
    %v1372 = vunpack.c.h.b16 %v1091
    %v1373 = vunpack.c.l.b16 %v1092
    %v1374 = vunpack.c.h.b16 %v1092
    %v1375 = vunpack.c.l.b16 %v1093
    %v1376 = vunpack.c.h.b16 %v1093
    %v1377 = vunpack.c.l.b16 %v1094
    %v1378 = vunpack.c.h.b16 %v1094
    %v1379 = vunpack.c.l.b16 %v1095
    %v1380 = vunpack.c.h.b16 %v1095
    %v1381 = vunpack.c.l.b16 %v1096
    %v1382 = vunpack.c.h.b16 %v1096
    %v1383 = vunpack.c.l.b16 %v1097
    %v1384 = vunpack.c.h.b16 %v1097
    %v1385 = vunpack.c.l.b16 %v1098
    %v1386 = vunpack.c.h.b16 %v1098
    %v1387 = vunpack.c.l.b16 %v1099
    %v1388 = vunpack.c.h.b16 %v1099
    %v1389 = vunpack.c.l.b16 %v1100
    %v1390 = vunpack.c.h.b16 %v1100
    %v1391 = vunpack.c.l.b16 %v1101
    %v1392 = vunpack.c.h.b16 %v1101
    %v1393 = vunpack.c.l.b16 %v1102
    %v1394 = vunpack.c.h.b16 %v1102
    %v1395 = vunpack.c.l.b16 %v1103
    %v1396 = vunpack.c.h.b16 %v1103
    %v1397 = vunpack.c.l.b16 %v1104
    %v1398 = vunpack.c.h.b16 %v1104
    %v1399 = vunpack.c.l.b16 %v1105
    %v1400 = vunpack.c.h.b16 %v1105
    %v1401 = vunpack.c.l.b16 %v1106
    %v1402 = vunpack.c.h.b16 %v1106
    %v1403 = vunpack.c.l.b16 %v1107
    %v1404 = vunpack.c.h.b16 %v1107
    %v1405 = vunpack.c.l.b16 %v1108
    %v1406 = vunpack.c.h.b16 %v1108
    %v1407 = vunpack.c.l.b16 %v1109
    %v1408 = vunpack.c.h.b16 %v1109
    %v1409 = vunpack.c.l.b16 %v1110
    %v1410 = vunpack.c.h.b16 %v1110
    %v1411 = vunpack.c.l.b16 %v1111
    %v1412 = vunpack.c.h.b16 %v1111
    %v1413 = vunpack.c.l.b16 %v1112
    %v1414 = vunpack.c.h.b16 %v1112
    %v1415 = vunpack.c.l.b16 %v1113
    %v1416 = vunpack.c.h.b16 %v1113
    %v1417 = vunpack.c.l.b16 %v1114
    %v1418 = vunpack.c.h.b16 %v1114
    %v1419 = vunpack.c.l.b16 %v1115
    %v1420 = vunpack.c.h.b16 %v1115
    %v1421 = vunpack.c.l.b16 %v1116
    %v1422 = vunpack.c.h.b16 %v1116
    %v1423 = vunpack.c.l.b16 %v1117
    %v1424 = vunpack.c.h.b16 %v1117
    %v1425 = vunpack.c.l.b16 %v1118
    %v1426 = vunpack.c.h.b16 %v1118
    %v1427 = vunpack.c.l.b16 %v1119
    %v1428 = vunpack.c.h.b16 %v1119
    %v1429 = vunpack.c.l.b16 %v1120
    %v1430 = vunpack.c.h.b16 %v1120
    %v1431 = vunpack.c.l.b16 %v1121
    %v1432 = vunpack.c.h.b16 %v1121
    %v1433 = vunpack.c.l.b16 %v1122
    %v1434 = vunpack.c.h.b16 %v1122
    %v1435 = vunpack.c.l.b16 %v1123
    %v1436 = vunpack.c.h.b16 %v1123
    %v1437 = vunpack.c.l.b16 %v1124
    %v1438 = vunpack.c.h.b16 %v1124
    %v1439 = vunpack.c.l.b16 %v1125
    %v1440 = vunpack.c.h.b16 %v1125
    %v1441 = vunpack.c.l.b16 %v1126
    %v1442 = vunpack.c.h.b16 %v1126
    %v1443 = vunpack.c.l.b16 %v1127
    %v1444 = vunpack.c.h.b16 %v1127
    %v1445 = vunpack.c.l.b16 %v1128
    %v1446 = vunpack.c.h.b16 %v1128
    %v1447 = vunpack.c.l.b16 %v1129
    %v1448 = vunpack.c.h.b16 %v1129
    %v1449 = vunpack.c.l.b16 %v1130
    %v1450 = vunpack.c.h.b16 %v1130
    %v1451 = vunpack.c.l.b16 %v1131
    %v1452 = vunpack.c.h.b16 %v1131
    %v1453 = vunpack.c.l.b16 %v1132
    %v1454 = vunpack.c.h.b16 %v1132
    %v1455 = vunpack.c.l.b16 %v1133
    %v1456 = vunpack.c.h.b16 %v1133
    %v1457 = vunpack.c.l.b16 %v1134
    %v1458 = vunpack.c.h.b16 %v1134
    %v1459 = vunpack.c.l.b16 %v1135
    %v1460 = vunpack.c.h.b16 %v1135
    %v1461 = vunpack.c.l.b16 %v1136
    %v1462 = vunpack.c.h.b16 %v1136
    %v1463 = vunpack.c.l.b16 %v1137
    %v1464 = vunpack.c.h.b16 %v1137
    %v1465 = vunpack.c.l.b16 %v1138
    %v1466 = vunpack.c.h.b16 %v1138
    %v1467 = vunpack.c.l.b16 %v1139
    %v1468 = vunpack.c.h.b16 %v1139
    %v1469 = vunpack.c.l.b16 %v1140
    %v1470 = vunpack.c.h.b16 %v1140
    %v1471 = vunpack.c.l.b16 %v1141
    %v1472 = vunpack.c.h.b16 %v1141
    %v1473 = vunpack.c.l.b16 %v1142
    %v1474 = vunpack.c.h.b16 %v1142
    %v1475 = vunpack.c.l.b16 %v1143
    %v1476 = vunpack.c.h.b16 %v1143
    %v1477 = vunpack.c.l.b16 %v1144
    %v1478 = vunpack.c.h.b16 %v1144
    %v1479 = vunpack.c.l.b16 %v1145
    %v1480 = vunpack.c.h.b16 %v1145
    %v1481 = vunpack.c.l.b16 %v1146
    %v1482 = vunpack.c.h.b16 %v1146
    %v1483 = vunpack.c.l.b16 %v1147
    %v1484 = vunpack.c.h.b16 %v1147
    %v1485 = vunpack.c.l.b16 %v1148
    %v1486 = vunpack.c.h.b16 %v1148
    %v1487 = vunpack.c.l.b16 %v1149
    %v1488 = vunpack.c.h.b16 %v1149
    %v1489 = vunpack.c.l.b16 %v1150
    %v1490 = vunpack.c.h.b16 %v1150
    %v1491 = vunpack.c.l.b16 %v1151
    %v1492 = vunpack.c.h.b16 %v1151
    %v1493 = vunpack.c.l.b16 %v1152
    %v1494 = vunpack.c.h.b16 %v1152
    %v1495 = vunpack.c.l.b16 %v1153
    %v1496 = vunpack.c.h.b16 %v1153
    %v1497 = vunpack.c.l.b16 %v1154
    %v1498 = vunpack.c.h.b16 %v1154
    %v1499 = vunpack.c.l.b16 %v1155
    %v1500 = vunpack.c.h.b16 %v1155
    %v1501 = vunpack.c.l.b16 %v1156
    %v1502 = vunpack.c.h.b16 %v1156
    %v1503 = vunpack.c.l.b16 %v1157
    %v1504 = vunpack.c.h.b16 %v1157
    %v1505 = vunpack.c.l.b16 %v1158
    %v1506 = vunpack.c.h.b16 %v1158
    %v1507 = vunpack.c.l.b16 %v1159
    %v1508 = vunpack.c.h.b16 %v1159
    %v1509 = vunpack.c.l.b16 %v1160
    %v1510 = vunpack.c.h.b16 %v1160
    %v1511 = vunpack.c.l.b16 %v1161
    %v1512 = vunpack.c.h.b16 %v1161
    %v1513 = vunpack.c.l.b16 %v1162
    %v1514 = vunpack.c.h.b16 %v1162
    %v1515 = vunpack.c.l.b16 %v1163
    %v1516 = vunpack.c.h.b16 %v1163
    %v1517 = vunpack.c.l.b16 %v1164
    %v1518 = vunpack.c.h.b16 %v1164
    %v1519 = vunpack.c.l.b16 %v1165
    %v1520 = vunpack.c.h.b16 %v1165
    %v1521 = vunpack.c.l.b16 %v1166
    %v1522 = vunpack.c.h.b16 %v1166
    %v1523 = vunpack.c.l.b16 %v1167
    %v1524 = vunpack.c.h.b16 %v1167
    %v1525 = vunpack.c.l.b16 %v1168
    %v1526 = vunpack.c.h.b16 %v1168
    %v1527 = vunpack.c.l.b16 %v1169
    %v1528 = vunpack.c.h.b16 %v1169
    %v1529 = vunpack.c.l.b16 %v1170
    %v1530 = vunpack.c.h.b16 %v1170
    %v1531 = vunpack.c.l.b16 %v1171
    %v1532 = vunpack.c.h.b16 %v1171
    %v1533 = vunpack.c.l.b16 %v1172
    %v1534 = vunpack.c.h.b16 %v1172
    %v1535 = vunpack.c.l.b16 %v1173
    %v1536 = vunpack.c.h.b16 %v1173
    %v1537 = vunpack.c.l.b16 %v1174
    %v1538 = vunpack.c.h.b16 %v1174
    %v1539 = vunpack.c.l.b16 %v1175
    %v1540 = vunpack.c.h.b16 %v1175
    %v1541 = vunpack.c.l.b16 %v1176
    %v1542 = vunpack.c.h.b16 %v1176
    %v1543 = vunpack.c.l.b16 %v1177
    %v1544 = vunpack.c.h.b16 %v1177
    %v1545 = vunpack.c.l.b16 %v1178
    %v1546 = vunpack.c.h.b16 %v1178
    %v1547 = vunpack.c.l.b16 %v1179
    %v1548 = vunpack.c.h.b16 %v1179
    %v1549 = vunpack.c.l.b16 %v1180
    %v1550 = vunpack.c.h.b16 %v1180
    %v1551 = vunpack.c.l.b16 %v1181
    %v1552 = vunpack.c.h.b16 %v1181
    %v1553 = vunpack.c.l.b16 %v1182
    %v1554 = vunpack.c.h.b16 %v1182
    %v1555 = vunpack.c.l.b16 %v1183
    %v1556 = vunpack.c.h.b16 %v1183
    %v1557 = vunpack.c.l.b16 %v1184
    %v1558 = vunpack.c.h.b16 %v1184
    %v1559 = vunpack.c.l.b16 %v1185
    %v1560 = vunpack.c.h.b16 %v1185
    %v1561 = vunpack.c.l.b16 %v1186
    %v1562 = vunpack.c.h.b16 %v1186
    %v1563 = vunpack.c.l.b16 %v1187
    %v1564 = vunpack.c.h.b16 %v1187
    %v1565 = vunpack.c.l.b16 %v1188
    %v1566 = vunpack.c.h.b16 %v1188
    %v1567 = vunpack.c.l.b16 %v1189
    %v1568 = vunpack.c.h.b16 %v1189
    %v1569 = vunpack.c.l.b16 %v1190
    %v1570 = vunpack.c.h.b16 %v1190
    %v1571 = vunpack.c.l.b16 %v1191
    %v1572 = vunpack.c.h.b16 %v1191
    %v1573 = vunpack.c.l.b16 %v1192
    %v1574 = vunpack.c.h.b16 %v1192
    %v1575 = vunpack.c.l.b16 %v1193
    %v1576 = vunpack.c.h.b16 %v1193
    %v1577 = vunpack.c.l.b16 %v1194
    %v1578 = vunpack.c.h.b16 %v1194
    %v1579 = vunpack.c.l.b16 %v1195
    %v1580 = vunpack.c.h.b16 %v1195
    %v1581 = vunpack.c.l.b16 %v1196
    %v1582 = vunpack.c.h.b16 %v1196
    %v1583 = vunpack.c.l.b16 %v1197
    %v1584 = vunpack.c.h.b16 %v1197
    %v1585 = vunpack.c.l.b16 %v1198
    %v1586 = vunpack.c.h.b16 %v1198
    %v1587 = vunpack.c.l.b16 %v1199
    %v1588 = vunpack.c.h.b16 %v1199
    %v1589 = vunpack.c.l.b16 %v1200
    %v1590 = vunpack.c.h.b16 %v1200
    %v1591 = vunpack.c.l.b16 %v1201
    %v1592 = vunpack.c.h.b16 %v1201
    %v1593 = vunpack.c.l.b16 %v1202
    %v1594 = vunpack.c.h.b16 %v1202
    %v1595 = vunpack.c.l.b16 %v1203
    %v1596 = vunpack.c.h.b16 %v1203
    %v1597 = vunpack.c.l.b16 %v1204
    %v1598 = vunpack.c.h.b16 %v1204
    %v1599 = vunpack.c.l.b16 %v1205
    %v1600 = vunpack.c.h.b16 %v1205
    %v1601 = vunpack.c.l.b16 %v1206
    %v1602 = vunpack.c.h.b16 %v1206
    %v1603 = vunpack.c.l.b16 %v1207
    %v1604 = vunpack.c.h.b16 %v1207
    %v1605 = vunpack.c.l.b16 %v1208
    %v1606 = vunpack.c.h.b16 %v1208
    %v1607 = vunpack.c.l.b16 %v1209
    %v1608 = vunpack.c.h.b16 %v1209
    %v1609 = vunpack.c.l.b16 %v1210
    %v1610 = vunpack.c.h.b16 %v1210
    %v1611 = vunpack.c.l.b16 %v1211
    %v1612 = vunpack.c.h.b16 %v1211
    %v1613 = vunpack.c.l.b16 %v1212
    %v1614 = vunpack.c.h.b16 %v1212
    %v1615 = vunpack.c.l.b16 %v1213
    %v1616 = vunpack.c.h.b16 %v1213
    %v1617 = vunpack.c.l.b16 %v1214
    %v1618 = vunpack.c.h.b16 %v1214
    %v1619 = vunpack.c.l.b16 %v1215
    %v1620 = vunpack.c.h.b16 %v1215
    %v1621 = vunpack.c.l.b16 %v1216
    %v1622 = vunpack.c.h.b16 %v1216
    %v1623 = vpack.c.b16 %v1371, %v1367
    %v1624 = vpack.c.b16 %v1372, %v1368
    %v1625 = vpack.c.b16 %v1373, %v1369
    %v1626 = vpack.c.b16 %v1374, %v1370
    %v1627 = vpack.c.b16 %v1379, %v1375
    %v1628 = vpack.c.b16 %v1380, %v1376
    %v1629 = vpack.c.b16 %v1381, %v1377
    %v1630 = vpack.c.b16 %v1382, %v1378
    %v1631 = vpack.c.b16 %v1387, %v1383
    %v1632 = vpack.c.b16 %v1388, %v1384
    %v1633 = vpack.c.b16 %v1389, %v1385
    %v1634 = vpack.c.b16 %v1390, %v1386
    %v1635 = vpack.c.b16 %v1395, %v1391
    %v1636 = vpack.c.b16 %v1396, %v1392
    %v1637 = vpack.c.b16 %v1397, %v1393
    %v1638 = vpack.c.b16 %v1398, %v1394
    %v1639 = vpack.c.b16 %v1403, %v1399
    %v1640 = vpack.c.b16 %v1404, %v1400
    %v1641 = vpack.c.b16 %v1405, %v1401
    %v1642 = vpack.c.b16 %v1406, %v1402
    %v1643 = vpack.c.b16 %v1411, %v1407
    %v1644 = vpack.c.b16 %v1412, %v1408
    %v1645 = vpack.c.b16 %v1413, %v1409
    %v1646 = vpack.c.b16 %v1414, %v1410
    %v1647 = vpack.c.b16 %v1419, %v1415
    %v1648 = vpack.c.b16 %v1420, %v1416
    %v1649 = vpack.c.b16 %v1421, %v1417
    %v1650 = vpack.c.b16 %v1422, %v1418
    %v1651 = vpack.c.b16 %v1427, %v1423
    %v1652 = vpack.c.b16 %v1428, %v1424
    %v1653 = vpack.c.b16 %v1429, %v1425
    %v1654 = vpack.c.b16 %v1430, %v1426
    %v1655 = vpack.c.b16 %v1435, %v1431
    %v1656 = vpack.c.b16 %v1436, %v1432
    %v1657 = vpack.c.b16 %v1437, %v1433
    %v1658 = vpack.c.b16 %v1438, %v1434
    %v1659 = vpack.c.b16 %v1443, %v1439
    %v1660 = vpack.c.b16 %v1444, %v1440
    %v1661 = vpack.c.b16 %v1445, %v1441
    %v1662 = vpack.c.b16 %v1446, %v1442
    %v1663 = vpack.c.b16 %v1451, %v1447
    %v1664 = vpack.c.b16 %v1452, %v1448
    %v1665 = vpack.c.b16 %v1453, %v1449
    %v1666 = vpack.c.b16 %v1454, %v1450
    %v1667 = vpack.c.b16 %v1459, %v1455
    %v1668 = vpack.c.b16 %v1460, %v1456
    %v1669 = vpack.c.b16 %v1461, %v1457
    %v1670 = vpack.c.b16 %v1462, %v1458
    %v1671 = vpack.c.b16 %v1467, %v1463
    %v1672 = vpack.c.b16 %v1468, %v1464
    %v1673 = vpack.c.b16 %v1469, %v1465
    %v1674 = vpack.c.b16 %v1470, %v1466
    %v1675 = vpack.c.b16 %v1475, %v1471
    %v1676 = vpack.c.b16 %v1476, %v1472
    %v1677 = vpack.c.b16 %v1477, %v1473
    %v1678 = vpack.c.b16 %v1478, %v1474
    %v1679 = vpack.c.b16 %v1483, %v1479
    %v1680 = vpack.c.b16 %v1484, %v1480
    %v1681 = vpack.c.b16 %v1485, %v1481
    %v1682 = vpack.c.b16 %v1486, %v1482
    %v1683 = vpack.c.b16 %v1491, %v1487
    %v1684 = vpack.c.b16 %v1492, %v1488
    %v1685 = vpack.c.b16 %v1493, %v1489
    %v1686 = vpack.c.b16 %v1494, %v1490
    %v1687 = vpack.c.b16 %v1499, %v1495
    %v1688 = vpack.c.b16 %v1500, %v1496
    %v1689 = vpack.c.b16 %v1501, %v1497
    %v1690 = vpack.c.b16 %v1502, %v1498
    %v1691 = vpack.c.b16 %v1507, %v1503
    %v1692 = vpack.c.b16 %v1508, %v1504
    %v1693 = vpack.c.b16 %v1509, %v1505
    %v1694 = vpack.c.b16 %v1510, %v1506
    %v1695 = vpack.c.b16 %v1515, %v1511
    %v1696 = vpack.c.b16 %v1516, %v1512
    %v1697 = vpack.c.b16 %v1517, %v1513
    %v1698 = vpack.c.b16 %v1518, %v1514
    %v1699 = vpack.c.b16 %v1523, %v1519
    %v1700 = vpack.c.b16 %v1524, %v1520
    %v1701 = vpack.c.b16 %v1525, %v1521
    %v1702 = vpack.c.b16 %v1526, %v1522
    %v1703 = vpack.c.b16 %v1531, %v1527
    %v1704 = vpack.c.b16 %v1532, %v1528
    %v1705 = vpack.c.b16 %v1533, %v1529
    %v1706 = vpack.c.b16 %v1534, %v1530
    %v1707 = vpack.c.b16 %v1539, %v1535
    %v1708 = vpack.c.b16 %v1540, %v1536
    %v1709 = vpack.c.b16 %v1541, %v1537
    %v1710 = vpack.c.b16 %v1542, %v1538
    %v1711 = vpack.c.b16 %v1547, %v1543
    %v1712 = vpack.c.b16 %v1548, %v1544
    %v1713 = vpack.c.b16 %v1549, %v1545
    %v1714 = vpack.c.b16 %v1550, %v1546
    %v1715 = vpack.c.b16 %v1555, %v1551
    %v1716 = vpack.c.b16 %v1556, %v1552
    %v1717 = vpack.c.b16 %v1557, %v1553
    %v1718 = vpack.c.b16 %v1558, %v1554
    %v1719 = vpack.c.b16 %v1563, %v1559
    %v1720 = vpack.c.b16 %v1564, %v1560
    %v1721 = vpack.c.b16 %v1565, %v1561
    %v1722 = vpack.c.b16 %v1566, %v1562
    %v1723 = vpack.c.b16 %v1571, %v1567
    %v1724 = vpack.c.b16 %v1572, %v1568
    %v1725 = vpack.c.b16 %v1573, %v1569
    %v1726 = vpack.c.b16 %v1574, %v1570
    %v1727 = vpack.c.b16 %v1579, %v1575
    %v1728 = vpack.c.b16 %v1580, %v1576
    %v1729 = vpack.c.b16 %v1581, %v1577
    %v1730 = vpack.c.b16 %v1582, %v1578
    %v1731 = vpack.c.b16 %v1587, %v1583
    %v1732 = vpack.c.b16 %v1588, %v1584
    %v1733 = vpack.c.b16 %v1589, %v1585
    %v1734 = vpack.c.b16 %v1590, %v1586
    %v1735 = vpack.c.b16 %v1595, %v1591
    %v1736 = vpack.c.b16 %v1596, %v1592
    %v1737 = vpack.c.b16 %v1597, %v1593
    %v1738 = vpack.c.b16 %v1598, %v1594
    %v1739 = vpack.c.b16 %v1603, %v1599
    %v1740 = vpack.c.b16 %v1604, %v1600
    %v1741 = vpack.c.b16 %v1605, %v1601
    %v1742 = vpack.c.b16 %v1606, %v1602
    %v1743 = vpack.c.b16 %v1611, %v1607
    %v1744 = vpack.c.b16 %v1612, %v1608
    %v1745 = vpack.c.b16 %v1613, %v1609
    %v1746 = vpack.c.b16 %v1614, %v1610
    %v1747 = vpack.c.b16 %v1619, %v1615
    %v1748 = vpack.c.b16 %v1620, %v1616
    %v1749 = vpack.c.b16 %v1621, %v1617
    %v1750 = vpack.c.b16 %v1622, %v1618
    %1879 = vmatprep.subr.bf16.mxu0 %v1652
    %1880 = vmatpush1.bf16.msra.mxu0 %v1651
    %1881 = vmatprep.subr.bf16.mxu0 %v1648
    %1882 = vmatpush1.bf16.msra.mxu0 %v1647
    %1883 = vmatprep.subr.bf16.mxu0 %v1644
    %1884 = vmatpush1.bf16.msra.mxu0 %v1643
    %1885 = vmatprep.subr.bf16.mxu0 %v1640
    %1886 = vmatpush1.bf16.msra.mxu0 %v1639
    %1887 = vmatprep.subr.bf16.mxu0 %v1636
    %1888 = vmatpush1.bf16.msra.mxu0 %v1635
    %1889 = vmatprep.subr.bf16.mxu0 %v1632
    %1890 = vmatpush1.bf16.msra.mxu0 %v1631
    %1891 = vmatprep.subr.bf16.mxu0 %v1628
    %1892 = vmatpush1.bf16.msra.mxu0 %v1627
    %1893 = vmatprep.subr.bf16.mxu0 %v1624
    %1894 = vmatpush1.bf16.msra.mxu0 %v1623
    %1895 = vmatprep.subr.bf16.mxu0 %v1684
    %1896 = vmatpush2.bf16.msra.mxu0 %v1683
    %1897 = vmatprep.subr.bf16.mxu0 %v1680
    %1898 = vmatpush2.bf16.msra.mxu0 %v1679
    %1899 = vmatprep.subr.bf16.mxu0 %v1676
    %1900 = vmatpush2.bf16.msra.mxu0 %v1675
    %1901 = vmatprep.subr.bf16.mxu0 %v1672
    %1902 = vmatpush2.bf16.msra.mxu0 %v1671
    %1903 = vmatprep.subr.bf16.mxu0 %v1668
    %1904 = vmatpush2.bf16.msra.mxu0 %v1667
    %1905 = vmatprep.subr.bf16.mxu0 %v1664
    %1906 = vmatpush2.bf16.msra.mxu0 %v1663
    %1907 = vmatprep.subr.bf16.mxu0 %v1660
    %1908 = vmatpush2.bf16.msra.mxu0 %v1659
    %1909 = vmatprep.subr.bf16.mxu0 %v1656
    %1910 = vmatpush2.bf16.msra.mxu0 %v1655
    %1911 = vmatprep.mubr.bf16.mxu0 %v1086
    %1912 = vmatmul.mubr.bf16.gmra.mxu0 %v1085
    %v1913 = vpop.f32.mrf.mxu0
    %v1914 = vadd.f32 %v1222, %v1913
    %v1915 = vpop.f32.mrf.mxu0
    %v1916 = vadd.f32 %v1226, %v1915
    %v1917 = vpop.f32.mrf.mxu0
    %v1918 = vadd.f32 %v1222, %v1917
    %v1919 = vpop.f32.mrf.mxu0
    %v1920 = vadd.f32 %v1226, %v1919
    %1921 = vdwg.mxu0
    %1922 = vmatprep.subr.bf16.mxu0 %v1716
    %1923 = vmatpush1.bf16.msra.mxu0 %v1715
    %1924 = vmatprep.subr.bf16.mxu0 %v1712
    %1925 = vmatpush1.bf16.msra.mxu0 %v1711
    %1926 = vmatprep.subr.bf16.mxu0 %v1708
    %1927 = vmatpush1.bf16.msra.mxu0 %v1707
    %1928 = vmatprep.subr.bf16.mxu0 %v1704
    %1929 = vmatpush1.bf16.msra.mxu0 %v1703
    %1930 = vmatprep.subr.bf16.mxu0 %v1700
    %1931 = vmatpush1.bf16.msra.mxu0 %v1699
    %1932 = vmatprep.subr.bf16.mxu0 %v1696
    %1933 = vmatpush1.bf16.msra.mxu0 %v1695
    %1934 = vmatprep.subr.bf16.mxu0 %v1692
    %1935 = vmatpush1.bf16.msra.mxu0 %v1691
    %1936 = vmatprep.subr.bf16.mxu0 %v1688
    %1937 = vmatpush1.bf16.msra.mxu0 %v1687
    %1938 = vmatprep.subr.bf16.mxu0 %v1748
    %1939 = vmatpush2.bf16.msra.mxu0 %v1747
    %1940 = vmatprep.subr.bf16.mxu0 %v1744
    %1941 = vmatpush2.bf16.msra.mxu0 %v1743
    %1942 = vmatprep.subr.bf16.mxu0 %v1740
    %1943 = vmatpush2.bf16.msra.mxu0 %v1739
    %1944 = vmatprep.subr.bf16.mxu0 %v1736
    %1945 = vmatpush2.bf16.msra.mxu0 %v1735
    %1946 = vmatprep.subr.bf16.mxu0 %v1732
    %1947 = vmatpush2.bf16.msra.mxu0 %v1731
    %1948 = vmatprep.subr.bf16.mxu0 %v1728
    %1949 = vmatpush2.bf16.msra.mxu0 %v1727
    %1950 = vmatprep.subr.bf16.mxu0 %v1724
    %1951 = vmatpush2.bf16.msra.mxu0 %v1723
    %1952 = vmatprep.subr.bf16.mxu0 %v1720
    %1953 = vmatpush2.bf16.msra.mxu0 %v1719
    %1954 = vmatprep.mubr.bf16.mxu0 %v1088
    %1955 = vmatmul.mubr.bf16.gmra.mxu0 %v1087
    %v1956 = vpop.f32.mrf.mxu0
    %v1957 = vadd.f32 %v1914, %v1956
    %v1958 = vpop.f32.mrf.mxu0
    %v1959 = vadd.f32 %v1916, %v1958
    %v1960 = vpop.f32.mrf.mxu0
    %v1961 = vadd.f32 %v1918, %v1960
    %v1962 = vpop.f32.mrf.mxu0
    %v1963 = vadd.f32 %v1920, %v1962
    %1964 = vdwg.mxu0
    %1965 = vmatprep.subr.bf16.mxu0 %v1654
    %1966 = vmatpush1.bf16.msra.mxu0 %v1653
    %1967 = vmatprep.subr.bf16.mxu0 %v1650
    %1968 = vmatpush1.bf16.msra.mxu0 %v1649
    %1969 = vmatprep.subr.bf16.mxu0 %v1646
    %1970 = vmatpush1.bf16.msra.mxu0 %v1645
    %1971 = vmatprep.subr.bf16.mxu0 %v1642
    %1972 = vmatpush1.bf16.msra.mxu0 %v1641
    %1973 = vmatprep.subr.bf16.mxu0 %v1638
    %1974 = vmatpush1.bf16.msra.mxu0 %v1637
    %1975 = vmatprep.subr.bf16.mxu0 %v1634
    %1976 = vmatpush1.bf16.msra.mxu0 %v1633
    %1977 = vmatprep.subr.bf16.mxu0 %v1630
    %1978 = vmatpush1.bf16.msra.mxu0 %v1629
    %1979 = vmatprep.subr.bf16.mxu0 %v1626
    %1980 = vmatpush1.bf16.msra.mxu0 %v1625
    %1981 = vmatprep.subr.bf16.mxu0 %v1686
    %1982 = vmatpush2.bf16.msra.mxu0 %v1685
    %1983 = vmatprep.subr.bf16.mxu0 %v1682
    %1984 = vmatpush2.bf16.msra.mxu0 %v1681
    %1985 = vmatprep.subr.bf16.mxu0 %v1678
    %1986 = vmatpush2.bf16.msra.mxu0 %v1677
    %1987 = vmatprep.subr.bf16.mxu0 %v1674
    %1988 = vmatpush2.bf16.msra.mxu0 %v1673
    %1989 = vmatprep.subr.bf16.mxu0 %v1670
    %1990 = vmatpush2.bf16.msra.mxu0 %v1669
    %1991 = vmatprep.subr.bf16.mxu0 %v1666
    %1992 = vmatpush2.bf16.msra.mxu0 %v1665
    %1993 = vmatprep.subr.bf16.mxu0 %v1662
    %1994 = vmatpush2.bf16.msra.mxu0 %v1661
    %1995 = vmatprep.subr.bf16.mxu0 %v1658
    %1996 = vmatpush2.bf16.msra.mxu0 %v1657
    %1997 = vmatprep.mubr.bf16.mxu0 %v1086
    %1998 = vmatmul.mubr.bf16.gmra.mxu0 %v1085
    %v1999 = vpop.f32.mrf.mxu0
    %v2000 = vadd.f32 %v1230, %v1999
    %v2001 = vpop.f32.mrf.mxu0
    %v2002 = vadd.f32 %v1234, %v2001
    %v2003 = vpop.f32.mrf.mxu0
    %v2004 = vadd.f32 %v1230, %v2003
    %v2005 = vpop.f32.mrf.mxu0
    %v2006 = vadd.f32 %v1234, %v2005
    %2007 = vdwg.mxu0
    %2008 = vmatprep.subr.bf16.mxu0 %v1718
    %2009 = vmatpush1.bf16.msra.mxu0 %v1717
    %2010 = vmatprep.subr.bf16.mxu0 %v1714
    %2011 = vmatpush1.bf16.msra.mxu0 %v1713
    %2012 = vmatprep.subr.bf16.mxu0 %v1710
    %2013 = vmatpush1.bf16.msra.mxu0 %v1709
    %2014 = vmatprep.subr.bf16.mxu0 %v1706
    %2015 = vmatpush1.bf16.msra.mxu0 %v1705
    %2016 = vmatprep.subr.bf16.mxu0 %v1702
    %2017 = vmatpush1.bf16.msra.mxu0 %v1701
    %2018 = vmatprep.subr.bf16.mxu0 %v1698
    %2019 = vmatpush1.bf16.msra.mxu0 %v1697
    %2020 = vmatprep.subr.bf16.mxu0 %v1694
    %2021 = vmatpush1.bf16.msra.mxu0 %v1693
    %2022 = vmatprep.subr.bf16.mxu0 %v1690
    %2023 = vmatpush1.bf16.msra.mxu0 %v1689
    %2024 = vmatprep.subr.bf16.mxu0 %v1750
    %2025 = vmatpush2.bf16.msra.mxu0 %v1749
    %2026 = vmatprep.subr.bf16.mxu0 %v1746
    %2027 = vmatpush2.bf16.msra.mxu0 %v1745
    %2028 = vmatprep.subr.bf16.mxu0 %v1742
    %2029 = vmatpush2.bf16.msra.mxu0 %v1741
    %2030 = vmatprep.subr.bf16.mxu0 %v1738
    %2031 = vmatpush2.bf16.msra.mxu0 %v1737
    %2032 = vmatprep.subr.bf16.mxu0 %v1734
    %2033 = vmatpush2.bf16.msra.mxu0 %v1733
    %2034 = vmatprep.subr.bf16.mxu0 %v1730
    %2035 = vmatpush2.bf16.msra.mxu0 %v1729
    %2036 = vmatprep.subr.bf16.mxu0 %v1726
    %2037 = vmatpush2.bf16.msra.mxu0 %v1725
    %2038 = vmatprep.subr.bf16.mxu0 %v1722
    %2039 = vmatpush2.bf16.msra.mxu0 %v1721
    %2040 = vmatprep.mubr.bf16.mxu0 %v1088
    %2041 = vmatmul.mubr.bf16.gmra.mxu0 %v1087
    %v2042 = vpop.f32.mrf.mxu0
    %v2043 = vadd.f32 %v2000, %v2042
    %v2044 = vpop.f32.mrf.mxu0
    %v2045 = vadd.f32 %v2002, %v2044
    %v2046 = vpop.f32.mrf.mxu0
    %v2047 = vadd.f32 %v2004, %v2046
    %v2048 = vpop.f32.mrf.mxu0
    %v2049 = vadd.f32 %v2006, %v2048
    %2050 = vdwg.mxu0
    %v2051 = vmax.f32 %v1957, 0.0
    %v2052 = vmax.f32 %v1959, 0.0
    %v2053 = vmax.f32 %v2043, 0.0
    %v2054 = vmax.f32 %v2045, 0.0
    %v2055 = vmax.f32 %v1961, 0.0
    %v2056 = vmax.f32 %v1963, 0.0
    %v2057 = vmax.f32 %v2047, 0.0
    %v2058 = vmax.f32 %v2049, 0.0
    %v2059 = vpack.c.bf16 %v2055, %v2051
    %v2060 = vpack.c.bf16 %v2056, %v2052
    %v2061 = vpack.c.bf16 %v2057, %v2053
    %v2062 = vpack.c.bf16 %v2058, %v2054
    %v2063 = vld [vmem:[#allocation6] sm:$0xff]
    %v2064 = vld [vmem:[#allocation6 + $0x8] sm:$0xff]
    %v2065 = vld [vmem:[#allocation6 + $0x10] sm:$0xff]
    %v2066 = vld [vmem:[#allocation6 + $0x18] sm:$0xff]
    %v2067 = vld [vmem:[#allocation6 + $0x20] sm:$0xff]
    %v2068 = vld [vmem:[#allocation6 + $0x28] sm:$0xff]
    %v2069 = vld [vmem:[#allocation6 + $0x30] sm:$0xff]
    %v2070 = vld [vmem:[#allocation6 + $0x38] sm:$0xff]
    %v2071 = vld [vmem:[#allocation6 + $0x40] sm:$0xff]
    %v2072 = vld [vmem:[#allocation6 + $0x48] sm:$0xff]
    %v2073 = vld [vmem:[#allocation6 + $0x50] sm:$0xff]
    %v2074 = vld [vmem:[#allocation6 + $0x58] sm:$0xff]
    %v2075 = vld [vmem:[#allocation6 + $0x60] sm:$0xff]
    %v2076 = vld [vmem:[#allocation6 + $0x68] sm:$0xff]
    %v2077 = vld [vmem:[#allocation6 + $0x70] sm:$0xff]
    %v2078 = vld [vmem:[#allocation6 + $0x78] sm:$0xff]
    %v2079 = vld [vmem:[#allocation6 + $0x80] sm:$0xff]
    %v2080 = vld [vmem:[#allocation6 + $0x88] sm:$0xff]
    %v2081 = vld [vmem:[#allocation6 + $0x90] sm:$0xff]
    %v2082 = vld [vmem:[#allocation6 + $0x98] sm:$0xff]
    %v2083 = vld [vmem:[#allocation6 + $0xa0] sm:$0xff]
    %v2084 = vld [vmem:[#allocation6 + $0xa8] sm:$0xff]
    %v2085 = vld [vmem:[#allocation6 + $0xb0] sm:$0xff]
    %v2086 = vld [vmem:[#allocation6 + $0xb8] sm:$0xff]
    %v2087 = vld [vmem:[#allocation6 + $0xc0] sm:$0xff]
    %v2088 = vld [vmem:[#allocation6 + $0xc8] sm:$0xff]
    %v2089 = vld [vmem:[#allocation6 + $0xd0] sm:$0xff]
    %v2090 = vld [vmem:[#allocation6 + $0xd8] sm:$0xff]
    %v2091 = vld [vmem:[#allocation6 + $0xe0] sm:$0xff]
    %v2092 = vld [vmem:[#allocation6 + $0xe8] sm:$0xff]
    %v2093 = vld [vmem:[#allocation6 + $0xf0] sm:$0xff]
    %v2094 = vld [vmem:[#allocation6 + $0xf8] sm:$0xff]
    %v2095 = vld [vmem:[#allocation6 + $0x100] sm:$0xff]
    %v2096 = vld [vmem:[#allocation6 + $0x108] sm:$0xff]
    %v2097 = vld [vmem:[#allocation6 + $0x110] sm:$0xff]
    %v2098 = vld [vmem:[#allocation6 + $0x118] sm:$0xff]
    %v2099 = vld [vmem:[#allocation6 + $0x120] sm:$0xff]
    %v2100 = vld [vmem:[#allocation6 + $0x128] sm:$0xff]
    %v2101 = vld [vmem:[#allocation6 + $0x130] sm:$0xff]
    %v2102 = vld [vmem:[#allocation6 + $0x138] sm:$0xff]
    %v2103 = vld [vmem:[#allocation6 + $0x140] sm:$0xff]
    %v2104 = vld [vmem:[#allocation6 + $0x148] sm:$0xff]
    %v2105 = vld [vmem:[#allocation6 + $0x150] sm:$0xff]
    %v2106 = vld [vmem:[#allocation6 + $0x158] sm:$0xff]
    %v2107 = vld [vmem:[#allocation6 + $0x160] sm:$0xff]
    %v2108 = vld [vmem:[#allocation6 + $0x168] sm:$0xff]
    %v2109 = vld [vmem:[#allocation6 + $0x170] sm:$0xff]
    %v2110 = vld [vmem:[#allocation6 + $0x178] sm:$0xff]
    %v2111 = vld [vmem:[#allocation6 + $0x180] sm:$0xff]
    %v2112 = vld [vmem:[#allocation6 + $0x188] sm:$0xff]
    %v2113 = vld [vmem:[#allocation6 + $0x190] sm:$0xff]
    %v2114 = vld [vmem:[#allocation6 + $0x198] sm:$0xff]
    %v2115 = vld [vmem:[#allocation6 + $0x1a0] sm:$0xff]
    %v2116 = vld [vmem:[#allocation6 + $0x1a8] sm:$0xff]
    %v2117 = vld [vmem:[#allocation6 + $0x1b0] sm:$0xff]
    %v2118 = vld [vmem:[#allocation6 + $0x1b8] sm:$0xff]
    %v2119 = vld [vmem:[#allocation6 + $0x1c0] sm:$0xff]
    %v2120 = vld [vmem:[#allocation6 + $0x1c8] sm:$0xff]
    %v2121 = vld [vmem:[#allocation6 + $0x1d0] sm:$0xff]
    %v2122 = vld [vmem:[#allocation6 + $0x1d8] sm:$0xff]
    %v2123 = vld [vmem:[#allocation6 + $0x1e0] sm:$0xff]
    %v2124 = vld [vmem:[#allocation6 + $0x1e8] sm:$0xff]
    %v2125 = vld [vmem:[#allocation6 + $0x1f0] sm:$0xff]
    %v2126 = vld [vmem:[#allocation6 + $0x1f8] sm:$0xff]
    %v2127 = vld [vmem:[#allocation6 + $0x200] sm:$0xff]
    %v2128 = vld [vmem:[#allocation6 + $0x208] sm:$0xff]
    %v2129 = vld [vmem:[#allocation6 + $0x210] sm:$0xff]
    %v2130 = vld [vmem:[#allocation6 + $0x218] sm:$0xff]
    %v2131 = vld [vmem:[#allocation6 + $0x220] sm:$0xff]
    %v2132 = vld [vmem:[#allocation6 + $0x228] sm:$0xff]
    %v2133 = vld [vmem:[#allocation6 + $0x230] sm:$0xff]
    %v2134 = vld [vmem:[#allocation6 + $0x238] sm:$0xff]
    %v2135 = vld [vmem:[#allocation6 + $0x240] sm:$0xff]
    %v2136 = vld [vmem:[#allocation6 + $0x248] sm:$0xff]
    %v2137 = vld [vmem:[#allocation6 + $0x250] sm:$0xff]
    %v2138 = vld [vmem:[#allocation6 + $0x258] sm:$0xff]
    %v2139 = vld [vmem:[#allocation6 + $0x260] sm:$0xff]
    %v2140 = vld [vmem:[#allocation6 + $0x268] sm:$0xff]
    %v2141 = vld [vmem:[#allocation6 + $0x270] sm:$0xff]
    %v2142 = vld [vmem:[#allocation6 + $0x278] sm:$0xff]
    %v2143 = vld [vmem:[#allocation6 + $0x280] sm:$0xff]
    %v2144 = vld [vmem:[#allocation6 + $0x288] sm:$0xff]
    %v2145 = vld [vmem:[#allocation6 + $0x290] sm:$0xff]
    %v2146 = vld [vmem:[#allocation6 + $0x298] sm:$0xff]
    %v2147 = vld [vmem:[#allocation6 + $0x2a0] sm:$0xff]
    %v2148 = vld [vmem:[#allocation6 + $0x2a8] sm:$0xff]
    %v2149 = vld [vmem:[#allocation6 + $0x2b0] sm:$0xff]
    %v2150 = vld [vmem:[#allocation6 + $0x2b8] sm:$0xff]
    %v2151 = vld [vmem:[#allocation6 + $0x2c0] sm:$0xff]
    %v2152 = vld [vmem:[#allocation6 + $0x2c8] sm:$0xff]
    %v2153 = vld [vmem:[#allocation6 + $0x2d0] sm:$0xff]
    %v2154 = vld [vmem:[#allocation6 + $0x2d8] sm:$0xff]
    %v2155 = vld [vmem:[#allocation6 + $0x2e0] sm:$0xff]
    %v2156 = vld [vmem:[#allocation6 + $0x2e8] sm:$0xff]
    %v2157 = vld [vmem:[#allocation6 + $0x2f0] sm:$0xff]
    %v2158 = vld [vmem:[#allocation6 + $0x2f8] sm:$0xff]
    %v2159 = vld [vmem:[#allocation6 + $0x300] sm:$0xff]
    %v2160 = vld [vmem:[#allocation6 + $0x308] sm:$0xff]
    %v2161 = vld [vmem:[#allocation6 + $0x310] sm:$0xff]
    %v2162 = vld [vmem:[#allocation6 + $0x318] sm:$0xff]
    %v2163 = vld [vmem:[#allocation6 + $0x320] sm:$0xff]
    %v2164 = vld [vmem:[#allocation6 + $0x328] sm:$0xff]
    %v2165 = vld [vmem:[#allocation6 + $0x330] sm:$0xff]
    %v2166 = vld [vmem:[#allocation6 + $0x338] sm:$0xff]
    %v2167 = vld [vmem:[#allocation6 + $0x340] sm:$0xff]
    %v2168 = vld [vmem:[#allocation6 + $0x348] sm:$0xff]
    %v2169 = vld [vmem:[#allocation6 + $0x350] sm:$0xff]
    %v2170 = vld [vmem:[#allocation6 + $0x358] sm:$0xff]
    %v2171 = vld [vmem:[#allocation6 + $0x360] sm:$0xff]
    %v2172 = vld [vmem:[#allocation6 + $0x368] sm:$0xff]
    %v2173 = vld [vmem:[#allocation6 + $0x370] sm:$0xff]
    %v2174 = vld [vmem:[#allocation6 + $0x378] sm:$0xff]
    %v2175 = vld [vmem:[#allocation6 + $0x380] sm:$0xff]
    %v2176 = vld [vmem:[#allocation6 + $0x388] sm:$0xff]
    %v2177 = vld [vmem:[#allocation6 + $0x390] sm:$0xff]
    %v2178 = vld [vmem:[#allocation6 + $0x398] sm:$0xff]
    %v2179 = vld [vmem:[#allocation6 + $0x3a0] sm:$0xff]
    %v2180 = vld [vmem:[#allocation6 + $0x3a8] sm:$0xff]
    %v2181 = vld [vmem:[#allocation6 + $0x3b0] sm:$0xff]
    %v2182 = vld [vmem:[#allocation6 + $0x3b8] sm:$0xff]
    %v2183 = vld [vmem:[#allocation6 + $0x3c0] sm:$0xff]
    %v2184 = vld [vmem:[#allocation6 + $0x3c8] sm:$0xff]
    %v2185 = vld [vmem:[#allocation6 + $0x3d0] sm:$0xff]
    %v2186 = vld [vmem:[#allocation6 + $0x3d8] sm:$0xff]
    %v2187 = vld [vmem:[#allocation6 + $0x3e0] sm:$0xff]
    %v2188 = vld [vmem:[#allocation6 + $0x3e8] sm:$0xff]
    %v2189 = vld [vmem:[#allocation6 + $0x3f0] sm:$0xff]
    %v2190 = vld [vmem:[#allocation6 + $0x3f8] sm:$0xff]
    %v2191 = vld [vmem:[%s8] sm:$0xf]
    %v2193 = vlaneseq
    %v2194 = vshrl.u32 %v2193, 7
    %v2195 = vsub.s32 0, %v2194
    %v2196 = vrot.slane %v2191, %v2195
    %v2197 = vlaneseq
    %v2198 = vshrl.u32 %v2197, 7
    %v2199 = vsub.s32 1, %v2198
    %v2200 = vrot.slane %v2191, %v2199
    %v2201 = vlaneseq
    %v2202 = vshrl.u32 %v2201, 7
    %v2203 = vsub.s32 2, %v2202
    %v2204 = vrot.slane %v2191, %v2203
    %v2205 = vlaneseq
    %v2206 = vshrl.u32 %v2205, 7
    %v2207 = vsub.s32 3, %v2206
    %v2208 = vrot.slane %v2191, %v2207
    %v2341 = vunpack.c.l.b16 %v2063
    %v2342 = vunpack.c.h.b16 %v2063
    %v2343 = vunpack.c.l.b16 %v2064
    %v2344 = vunpack.c.h.b16 %v2064
    %v2345 = vunpack.c.l.b16 %v2065
    %v2346 = vunpack.c.h.b16 %v2065
    %v2347 = vunpack.c.l.b16 %v2066
    %v2348 = vunpack.c.h.b16 %v2066
    %v2349 = vunpack.c.l.b16 %v2067
    %v2350 = vunpack.c.h.b16 %v2067
    %v2351 = vunpack.c.l.b16 %v2068
    %v2352 = vunpack.c.h.b16 %v2068
    %v2353 = vunpack.c.l.b16 %v2069
    %v2354 = vunpack.c.h.b16 %v2069
    %v2355 = vunpack.c.l.b16 %v2070
    %v2356 = vunpack.c.h.b16 %v2070
    %v2357 = vunpack.c.l.b16 %v2071
    %v2358 = vunpack.c.h.b16 %v2071
    %v2359 = vunpack.c.l.b16 %v2072
    %v2360 = vunpack.c.h.b16 %v2072
    %v2361 = vunpack.c.l.b16 %v2073
    %v2362 = vunpack.c.h.b16 %v2073
    %v2363 = vunpack.c.l.b16 %v2074
    %v2364 = vunpack.c.h.b16 %v2074
    %v2365 = vunpack.c.l.b16 %v2075
    %v2366 = vunpack.c.h.b16 %v2075
    %v2367 = vunpack.c.l.b16 %v2076
    %v2368 = vunpack.c.h.b16 %v2076
    %v2369 = vunpack.c.l.b16 %v2077
    %v2370 = vunpack.c.h.b16 %v2077
    %v2371 = vunpack.c.l.b16 %v2078
    %v2372 = vunpack.c.h.b16 %v2078
    %v2373 = vunpack.c.l.b16 %v2079
    %v2374 = vunpack.c.h.b16 %v2079
    %v2375 = vunpack.c.l.b16 %v2080
    %v2376 = vunpack.c.h.b16 %v2080
    %v2377 = vunpack.c.l.b16 %v2081
    %v2378 = vunpack.c.h.b16 %v2081
    %v2379 = vunpack.c.l.b16 %v2082
    %v2380 = vunpack.c.h.b16 %v2082
    %v2381 = vunpack.c.l.b16 %v2083
    %v2382 = vunpack.c.h.b16 %v2083
    %v2383 = vunpack.c.l.b16 %v2084
    %v2384 = vunpack.c.h.b16 %v2084
    %v2385 = vunpack.c.l.b16 %v2085
    %v2386 = vunpack.c.h.b16 %v2085
    %v2387 = vunpack.c.l.b16 %v2086
    %v2388 = vunpack.c.h.b16 %v2086
    %v2389 = vunpack.c.l.b16 %v2087
    %v2390 = vunpack.c.h.b16 %v2087
    %v2391 = vunpack.c.l.b16 %v2088
    %v2392 = vunpack.c.h.b16 %v2088
    %v2393 = vunpack.c.l.b16 %v2089
    %v2394 = vunpack.c.h.b16 %v2089
    %v2395 = vunpack.c.l.b16 %v2090
    %v2396 = vunpack.c.h.b16 %v2090
    %v2397 = vunpack.c.l.b16 %v2091
    %v2398 = vunpack.c.h.b16 %v2091
    %v2399 = vunpack.c.l.b16 %v2092
    %v2400 = vunpack.c.h.b16 %v2092
    %v2401 = vunpack.c.l.b16 %v2093
    %v2402 = vunpack.c.h.b16 %v2093
    %v2403 = vunpack.c.l.b16 %v2094
    %v2404 = vunpack.c.h.b16 %v2094
    %v2405 = vunpack.c.l.b16 %v2095
    %v2406 = vunpack.c.h.b16 %v2095
    %v2407 = vunpack.c.l.b16 %v2096
    %v2408 = vunpack.c.h.b16 %v2096
    %v2409 = vunpack.c.l.b16 %v2097
    %v2410 = vunpack.c.h.b16 %v2097
    %v2411 = vunpack.c.l.b16 %v2098
    %v2412 = vunpack.c.h.b16 %v2098
    %v2413 = vunpack.c.l.b16 %v2099
    %v2414 = vunpack.c.h.b16 %v2099
    %v2415 = vunpack.c.l.b16 %v2100
    %v2416 = vunpack.c.h.b16 %v2100
    %v2417 = vunpack.c.l.b16 %v2101
    %v2418 = vunpack.c.h.b16 %v2101
    %v2419 = vunpack.c.l.b16 %v2102
    %v2420 = vunpack.c.h.b16 %v2102
    %v2421 = vunpack.c.l.b16 %v2103
    %v2422 = vunpack.c.h.b16 %v2103
    %v2423 = vunpack.c.l.b16 %v2104
    %v2424 = vunpack.c.h.b16 %v2104
    %v2425 = vunpack.c.l.b16 %v2105
    %v2426 = vunpack.c.h.b16 %v2105
    %v2427 = vunpack.c.l.b16 %v2106
    %v2428 = vunpack.c.h.b16 %v2106
    %v2429 = vunpack.c.l.b16 %v2107
    %v2430 = vunpack.c.h.b16 %v2107
    %v2431 = vunpack.c.l.b16 %v2108
    %v2432 = vunpack.c.h.b16 %v2108
    %v2433 = vunpack.c.l.b16 %v2109
    %v2434 = vunpack.c.h.b16 %v2109
    %v2435 = vunpack.c.l.b16 %v2110
    %v2436 = vunpack.c.h.b16 %v2110
    %v2437 = vunpack.c.l.b16 %v2111
    %v2438 = vunpack.c.h.b16 %v2111
    %v2439 = vunpack.c.l.b16 %v2112
    %v2440 = vunpack.c.h.b16 %v2112
    %v2441 = vunpack.c.l.b16 %v2113
    %v2442 = vunpack.c.h.b16 %v2113
    %v2443 = vunpack.c.l.b16 %v2114
    %v2444 = vunpack.c.h.b16 %v2114
    %v2445 = vunpack.c.l.b16 %v2115
    %v2446 = vunpack.c.h.b16 %v2115
    %v2447 = vunpack.c.l.b16 %v2116
    %v2448 = vunpack.c.h.b16 %v2116
    %v2449 = vunpack.c.l.b16 %v2117
    %v2450 = vunpack.c.h.b16 %v2117
    %v2451 = vunpack.c.l.b16 %v2118
    %v2452 = vunpack.c.h.b16 %v2118
    %v2453 = vunpack.c.l.b16 %v2119
    %v2454 = vunpack.c.h.b16 %v2119
    %v2455 = vunpack.c.l.b16 %v2120
    %v2456 = vunpack.c.h.b16 %v2120
    %v2457 = vunpack.c.l.b16 %v2121
    %v2458 = vunpack.c.h.b16 %v2121
    %v2459 = vunpack.c.l.b16 %v2122
    %v2460 = vunpack.c.h.b16 %v2122
    %v2461 = vunpack.c.l.b16 %v2123
    %v2462 = vunpack.c.h.b16 %v2123
    %v2463 = vunpack.c.l.b16 %v2124
    %v2464 = vunpack.c.h.b16 %v2124
    %v2465 = vunpack.c.l.b16 %v2125
    %v2466 = vunpack.c.h.b16 %v2125
    %v2467 = vunpack.c.l.b16 %v2126
    %v2468 = vunpack.c.h.b16 %v2126
    %v2469 = vunpack.c.l.b16 %v2127
    %v2470 = vunpack.c.h.b16 %v2127
    %v2471 = vunpack.c.l.b16 %v2128
    %v2472 = vunpack.c.h.b16 %v2128
    %v2473 = vunpack.c.l.b16 %v2129
    %v2474 = vunpack.c.h.b16 %v2129
    %v2475 = vunpack.c.l.b16 %v2130
    %v2476 = vunpack.c.h.b16 %v2130
    %v2477 = vunpack.c.l.b16 %v2131
    %v2478 = vunpack.c.h.b16 %v2131
    %v2479 = vunpack.c.l.b16 %v2132
    %v2480 = vunpack.c.h.b16 %v2132
    %v2481 = vunpack.c.l.b16 %v2133
    %v2482 = vunpack.c.h.b16 %v2133
    %v2483 = vunpack.c.l.b16 %v2134
    %v2484 = vunpack.c.h.b16 %v2134
    %v2485 = vunpack.c.l.b16 %v2135
    %v2486 = vunpack.c.h.b16 %v2135
    %v2487 = vunpack.c.l.b16 %v2136
    %v2488 = vunpack.c.h.b16 %v2136
    %v2489 = vunpack.c.l.b16 %v2137
    %v2490 = vunpack.c.h.b16 %v2137
    %v2491 = vunpack.c.l.b16 %v2138
    %v2492 = vunpack.c.h.b16 %v2138
    %v2493 = vunpack.c.l.b16 %v2139
    %v2494 = vunpack.c.h.b16 %v2139
    %v2495 = vunpack.c.l.b16 %v2140
    %v2496 = vunpack.c.h.b16 %v2140
    %v2497 = vunpack.c.l.b16 %v2141
    %v2498 = vunpack.c.h.b16 %v2141
    %v2499 = vunpack.c.l.b16 %v2142
    %v2500 = vunpack.c.h.b16 %v2142
    %v2501 = vunpack.c.l.b16 %v2143
    %v2502 = vunpack.c.h.b16 %v2143
    %v2503 = vunpack.c.l.b16 %v2144
    %v2504 = vunpack.c.h.b16 %v2144
    %v2505 = vunpack.c.l.b16 %v2145
    %v2506 = vunpack.c.h.b16 %v2145
    %v2507 = vunpack.c.l.b16 %v2146
    %v2508 = vunpack.c.h.b16 %v2146
    %v2509 = vunpack.c.l.b16 %v2147
    %v2510 = vunpack.c.h.b16 %v2147
    %v2511 = vunpack.c.l.b16 %v2148
    %v2512 = vunpack.c.h.b16 %v2148
    %v2513 = vunpack.c.l.b16 %v2149
    %v2514 = vunpack.c.h.b16 %v2149
    %v2515 = vunpack.c.l.b16 %v2150
    %v2516 = vunpack.c.h.b16 %v2150
    %v2517 = vunpack.c.l.b16 %v2151
    %v2518 = vunpack.c.h.b16 %v2151
    %v2519 = vunpack.c.l.b16 %v2152
    %v2520 = vunpack.c.h.b16 %v2152
    %v2521 = vunpack.c.l.b16 %v2153
    %v2522 = vunpack.c.h.b16 %v2153
    %v2523 = vunpack.c.l.b16 %v2154
    %v2524 = vunpack.c.h.b16 %v2154
    %v2525 = vunpack.c.l.b16 %v2155
    %v2526 = vunpack.c.h.b16 %v2155
    %v2527 = vunpack.c.l.b16 %v2156
    %v2528 = vunpack.c.h.b16 %v2156
    %v2529 = vunpack.c.l.b16 %v2157
    %v2530 = vunpack.c.h.b16 %v2157
    %v2531 = vunpack.c.l.b16 %v2158
    %v2532 = vunpack.c.h.b16 %v2158
    %v2533 = vunpack.c.l.b16 %v2159
    %v2534 = vunpack.c.h.b16 %v2159
    %v2535 = vunpack.c.l.b16 %v2160
    %v2536 = vunpack.c.h.b16 %v2160
    %v2537 = vunpack.c.l.b16 %v2161
    %v2538 = vunpack.c.h.b16 %v2161
    %v2539 = vunpack.c.l.b16 %v2162
    %v2540 = vunpack.c.h.b16 %v2162
    %v2541 = vunpack.c.l.b16 %v2163
    %v2542 = vunpack.c.h.b16 %v2163
    %v2543 = vunpack.c.l.b16 %v2164
    %v2544 = vunpack.c.h.b16 %v2164
    %v2545 = vunpack.c.l.b16 %v2165
    %v2546 = vunpack.c.h.b16 %v2165
    %v2547 = vunpack.c.l.b16 %v2166
    %v2548 = vunpack.c.h.b16 %v2166
    %v2549 = vunpack.c.l.b16 %v2167
    %v2550 = vunpack.c.h.b16 %v2167
    %v2551 = vunpack.c.l.b16 %v2168
    %v2552 = vunpack.c.h.b16 %v2168
    %v2553 = vunpack.c.l.b16 %v2169
    %v2554 = vunpack.c.h.b16 %v2169
    %v2555 = vunpack.c.l.b16 %v2170
    %v2556 = vunpack.c.h.b16 %v2170
    %v2557 = vunpack.c.l.b16 %v2171
    %v2558 = vunpack.c.h.b16 %v2171
    %v2559 = vunpack.c.l.b16 %v2172
    %v2560 = vunpack.c.h.b16 %v2172
    %v2561 = vunpack.c.l.b16 %v2173
    %v2562 = vunpack.c.h.b16 %v2173
    %v2563 = vunpack.c.l.b16 %v2174
    %v2564 = vunpack.c.h.b16 %v2174
    %v2565 = vunpack.c.l.b16 %v2175
    %v2566 = vunpack.c.h.b16 %v2175
    %v2567 = vunpack.c.l.b16 %v2176
    %v2568 = vunpack.c.h.b16 %v2176
    %v2569 = vunpack.c.l.b16 %v2177
    %v2570 = vunpack.c.h.b16 %v2177
    %v2571 = vunpack.c.l.b16 %v2178
    %v2572 = vunpack.c.h.b16 %v2178
    %v2573 = vunpack.c.l.b16 %v2179
    %v2574 = vunpack.c.h.b16 %v2179
    %v2575 = vunpack.c.l.b16 %v2180
    %v2576 = vunpack.c.h.b16 %v2180
    %v2577 = vunpack.c.l.b16 %v2181
    %v2578 = vunpack.c.h.b16 %v2181
    %v2579 = vunpack.c.l.b16 %v2182
    %v2580 = vunpack.c.h.b16 %v2182
    %v2581 = vunpack.c.l.b16 %v2183
    %v2582 = vunpack.c.h.b16 %v2183
    %v2583 = vunpack.c.l.b16 %v2184
    %v2584 = vunpack.c.h.b16 %v2184
    %v2585 = vunpack.c.l.b16 %v2185
    %v2586 = vunpack.c.h.b16 %v2185
    %v2587 = vunpack.c.l.b16 %v2186
    %v2588 = vunpack.c.h.b16 %v2186
    %v2589 = vunpack.c.l.b16 %v2187
    %v2590 = vunpack.c.h.b16 %v2187
    %v2591 = vunpack.c.l.b16 %v2188
    %v2592 = vunpack.c.h.b16 %v2188
    %v2593 = vunpack.c.l.b16 %v2189
    %v2594 = vunpack.c.h.b16 %v2189
    %v2595 = vunpack.c.l.b16 %v2190
    %v2596 = vunpack.c.h.b16 %v2190
    %v2597 = vpack.c.b16 %v2345, %v2341
    %v2598 = vpack.c.b16 %v2346, %v2342
    %v2599 = vpack.c.b16 %v2347, %v2343
    %v2600 = vpack.c.b16 %v2348, %v2344
    %v2601 = vpack.c.b16 %v2353, %v2349
    %v2602 = vpack.c.b16 %v2354, %v2350
    %v2603 = vpack.c.b16 %v2355, %v2351
    %v2604 = vpack.c.b16 %v2356, %v2352
    %v2605 = vpack.c.b16 %v2361, %v2357
    %v2606 = vpack.c.b16 %v2362, %v2358
    %v2607 = vpack.c.b16 %v2363, %v2359
    %v2608 = vpack.c.b16 %v2364, %v2360
    %v2609 = vpack.c.b16 %v2369, %v2365
    %v2610 = vpack.c.b16 %v2370, %v2366
    %v2611 = vpack.c.b16 %v2371, %v2367
    %v2612 = vpack.c.b16 %v2372, %v2368
    %v2613 = vpack.c.b16 %v2377, %v2373
    %v2614 = vpack.c.b16 %v2378, %v2374
    %v2615 = vpack.c.b16 %v2379, %v2375
    %v2616 = vpack.c.b16 %v2380, %v2376
    %v2617 = vpack.c.b16 %v2385, %v2381
    %v2618 = vpack.c.b16 %v2386, %v2382
    %v2619 = vpack.c.b16 %v2387, %v2383
    %v2620 = vpack.c.b16 %v2388, %v2384
    %v2621 = vpack.c.b16 %v2393, %v2389
    %v2622 = vpack.c.b16 %v2394, %v2390
    %v2623 = vpack.c.b16 %v2395, %v2391
    %v2624 = vpack.c.b16 %v2396, %v2392
    %v2625 = vpack.c.b16 %v2401, %v2397
    %v2626 = vpack.c.b16 %v2402, %v2398
    %v2627 = vpack.c.b16 %v2403, %v2399
    %v2628 = vpack.c.b16 %v2404, %v2400
    %v2629 = vpack.c.b16 %v2409, %v2405
    %v2630 = vpack.c.b16 %v2410, %v2406
    %v2631 = vpack.c.b16 %v2411, %v2407
    %v2632 = vpack.c.b16 %v2412, %v2408
    %v2633 = vpack.c.b16 %v2417, %v2413
    %v2634 = vpack.c.b16 %v2418, %v2414
    %v2635 = vpack.c.b16 %v2419, %v2415
    %v2636 = vpack.c.b16 %v2420, %v2416
    %v2637 = vpack.c.b16 %v2425, %v2421
    %v2638 = vpack.c.b16 %v2426, %v2422
    %v2639 = vpack.c.b16 %v2427, %v2423
    %v2640 = vpack.c.b16 %v2428, %v2424
    %v2641 = vpack.c.b16 %v2433, %v2429
    %v2642 = vpack.c.b16 %v2434, %v2430
    %v2643 = vpack.c.b16 %v2435, %v2431
    %v2644 = vpack.c.b16 %v2436, %v2432
    %v2645 = vpack.c.b16 %v2441, %v2437
    %v2646 = vpack.c.b16 %v2442, %v2438
    %v2647 = vpack.c.b16 %v2443, %v2439
    %v2648 = vpack.c.b16 %v2444, %v2440
    %v2649 = vpack.c.b16 %v2449, %v2445
    %v2650 = vpack.c.b16 %v2450, %v2446
    %v2651 = vpack.c.b16 %v2451, %v2447
    %v2652 = vpack.c.b16 %v2452, %v2448
    %v2653 = vpack.c.b16 %v2457, %v2453
    %v2654 = vpack.c.b16 %v2458, %v2454
    %v2655 = vpack.c.b16 %v2459, %v2455
    %v2656 = vpack.c.b16 %v2460, %v2456
    %v2657 = vpack.c.b16 %v2465, %v2461
    %v2658 = vpack.c.b16 %v2466, %v2462
    %v2659 = vpack.c.b16 %v2467, %v2463
    %v2660 = vpack.c.b16 %v2468, %v2464
    %v2661 = vpack.c.b16 %v2473, %v2469
    %v2662 = vpack.c.b16 %v2474, %v2470
    %v2663 = vpack.c.b16 %v2475, %v2471
    %v2664 = vpack.c.b16 %v2476, %v2472
    %v2665 = vpack.c.b16 %v2481, %v2477
    %v2666 = vpack.c.b16 %v2482, %v2478
    %v2667 = vpack.c.b16 %v2483, %v2479
    %v2668 = vpack.c.b16 %v2484, %v2480
    %v2669 = vpack.c.b16 %v2489, %v2485
    %v2670 = vpack.c.b16 %v2490, %v2486
    %v2671 = vpack.c.b16 %v2491, %v2487
    %v2672 = vpack.c.b16 %v2492, %v2488
    %v2673 = vpack.c.b16 %v2497, %v2493
    %v2674 = vpack.c.b16 %v2498, %v2494
    %v2675 = vpack.c.b16 %v2499, %v2495
    %v2676 = vpack.c.b16 %v2500, %v2496
    %v2677 = vpack.c.b16 %v2505, %v2501
    %v2678 = vpack.c.b16 %v2506, %v2502
    %v2679 = vpack.c.b16 %v2507, %v2503
    %v2680 = vpack.c.b16 %v2508, %v2504
    %v2681 = vpack.c.b16 %v2513, %v2509
    %v2682 = vpack.c.b16 %v2514, %v2510
    %v2683 = vpack.c.b16 %v2515, %v2511
    %v2684 = vpack.c.b16 %v2516, %v2512
    %v2685 = vpack.c.b16 %v2521, %v2517
    %v2686 = vpack.c.b16 %v2522, %v2518
    %v2687 = vpack.c.b16 %v2523, %v2519
    %v2688 = vpack.c.b16 %v2524, %v2520
    %v2689 = vpack.c.b16 %v2529, %v2525
    %v2690 = vpack.c.b16 %v2530, %v2526
    %v2691 = vpack.c.b16 %v2531, %v2527
    %v2692 = vpack.c.b16 %v2532, %v2528
    %v2693 = vpack.c.b16 %v2537, %v2533
    %v2694 = vpack.c.b16 %v2538, %v2534
    %v2695 = vpack.c.b16 %v2539, %v2535
    %v2696 = vpack.c.b16 %v2540, %v2536
    %v2697 = vpack.c.b16 %v2545, %v2541
    %v2698 = vpack.c.b16 %v2546, %v2542
    %v2699 = vpack.c.b16 %v2547, %v2543
    %v2700 = vpack.c.b16 %v2548, %v2544
    %v2701 = vpack.c.b16 %v2553, %v2549
    %v2702 = vpack.c.b16 %v2554, %v2550
    %v2703 = vpack.c.b16 %v2555, %v2551
    %v2704 = vpack.c.b16 %v2556, %v2552
    %v2705 = vpack.c.b16 %v2561, %v2557
    %v2706 = vpack.c.b16 %v2562, %v2558
    %v2707 = vpack.c.b16 %v2563, %v2559
    %v2708 = vpack.c.b16 %v2564, %v2560
    %v2709 = vpack.c.b16 %v2569, %v2565
    %v2710 = vpack.c.b16 %v2570, %v2566
    %v2711 = vpack.c.b16 %v2571, %v2567
    %v2712 = vpack.c.b16 %v2572, %v2568
    %v2713 = vpack.c.b16 %v2577, %v2573
    %v2714 = vpack.c.b16 %v2578, %v2574
    %v2715 = vpack.c.b16 %v2579, %v2575
    %v2716 = vpack.c.b16 %v2580, %v2576
    %v2717 = vpack.c.b16 %v2585, %v2581
    %v2718 = vpack.c.b16 %v2586, %v2582
    %v2719 = vpack.c.b16 %v2587, %v2583
    %v2720 = vpack.c.b16 %v2588, %v2584
    %v2721 = vpack.c.b16 %v2593, %v2589
    %v2722 = vpack.c.b16 %v2594, %v2590
    %v2723 = vpack.c.b16 %v2595, %v2591
    %v2724 = vpack.c.b16 %v2596, %v2592
    %2853 = vmatprep.subr.bf16.mxu0 %v2626
    %2854 = vmatpush1.bf16.msra.mxu0 %v2625
    %2855 = vmatprep.subr.bf16.mxu0 %v2622
    %2856 = vmatpush1.bf16.msra.mxu0 %v2621
    %2857 = vmatprep.subr.bf16.mxu0 %v2618
    %2858 = vmatpush1.bf16.msra.mxu0 %v2617
    %2859 = vmatprep.subr.bf16.mxu0 %v2614
    %2860 = vmatpush1.bf16.msra.mxu0 %v2613
    %2861 = vmatprep.subr.bf16.mxu0 %v2610
    %2862 = vmatpush1.bf16.msra.mxu0 %v2609
    %2863 = vmatprep.subr.bf16.mxu0 %v2606
    %2864 = vmatpush1.bf16.msra.mxu0 %v2605
    %2865 = vmatprep.subr.bf16.mxu0 %v2602
    %2866 = vmatpush1.bf16.msra.mxu0 %v2601
    %2867 = vmatprep.subr.bf16.mxu0 %v2598
    %2868 = vmatpush1.bf16.msra.mxu0 %v2597
    %2869 = vmatprep.subr.bf16.mxu0 %v2658
    %2870 = vmatpush2.bf16.msra.mxu0 %v2657
    %2871 = vmatprep.subr.bf16.mxu0 %v2654
    %2872 = vmatpush2.bf16.msra.mxu0 %v2653
    %2873 = vmatprep.subr.bf16.mxu0 %v2650
    %2874 = vmatpush2.bf16.msra.mxu0 %v2649
    %2875 = vmatprep.subr.bf16.mxu0 %v2646
    %2876 = vmatpush2.bf16.msra.mxu0 %v2645
    %2877 = vmatprep.subr.bf16.mxu0 %v2642
    %2878 = vmatpush2.bf16.msra.mxu0 %v2641
    %2879 = vmatprep.subr.bf16.mxu0 %v2638
    %2880 = vmatpush2.bf16.msra.mxu0 %v2637
    %2881 = vmatprep.subr.bf16.mxu0 %v2634
    %2882 = vmatpush2.bf16.msra.mxu0 %v2633
    %2883 = vmatprep.subr.bf16.mxu0 %v2630
    %2884 = vmatpush2.bf16.msra.mxu0 %v2629
    %2885 = vmatprep.mubr.bf16.mxu0 %v2060
    %2886 = vmatmul.mubr.bf16.gmra.mxu0 %v2059
    %v2887 = vpop.f32.mrf.mxu0
    %v2888 = vadd.f32 %v2196, %v2887
    %v2889 = vpop.f32.mrf.mxu0
    %v2890 = vadd.f32 %v2200, %v2889
    %v2891 = vpop.f32.mrf.mxu0
    %v2892 = vadd.f32 %v2196, %v2891
    %v2893 = vpop.f32.mrf.mxu0
    %v2894 = vadd.f32 %v2200, %v2893
    %2895 = vdwg.mxu0
    %2896 = vmatprep.subr.bf16.mxu0 %v2690
    %2897 = vmatpush1.bf16.msra.mxu0 %v2689
    %2898 = vmatprep.subr.bf16.mxu0 %v2686
    %2899 = vmatpush1.bf16.msra.mxu0 %v2685
    %2900 = vmatprep.subr.bf16.mxu0 %v2682
    %2901 = vmatpush1.bf16.msra.mxu0 %v2681
    %2902 = vmatprep.subr.bf16.mxu0 %v2678
    %2903 = vmatpush1.bf16.msra.mxu0 %v2677
    %2904 = vmatprep.subr.bf16.mxu0 %v2674
    %2905 = vmatpush1.bf16.msra.mxu0 %v2673
    %2906 = vmatprep.subr.bf16.mxu0 %v2670
    %2907 = vmatpush1.bf16.msra.mxu0 %v2669
    %2908 = vmatprep.subr.bf16.mxu0 %v2666
    %2909 = vmatpush1.bf16.msra.mxu0 %v2665
    %2910 = vmatprep.subr.bf16.mxu0 %v2662
    %2911 = vmatpush1.bf16.msra.mxu0 %v2661
    %2912 = vmatprep.subr.bf16.mxu0 %v2722
    %2913 = vmatpush2.bf16.msra.mxu0 %v2721
    %2914 = vmatprep.subr.bf16.mxu0 %v2718
    %2915 = vmatpush2.bf16.msra.mxu0 %v2717
    %2916 = vmatprep.subr.bf16.mxu0 %v2714
    %2917 = vmatpush2.bf16.msra.mxu0 %v2713
    %2918 = vmatprep.subr.bf16.mxu0 %v2710
    %2919 = vmatpush2.bf16.msra.mxu0 %v2709
    %2920 = vmatprep.subr.bf16.mxu0 %v2706
    %2921 = vmatpush2.bf16.msra.mxu0 %v2705
    %2922 = vmatprep.subr.bf16.mxu0 %v2702
    %2923 = vmatpush2.bf16.msra.mxu0 %v2701
    %2924 = vmatprep.subr.bf16.mxu0 %v2698
    %2925 = vmatpush2.bf16.msra.mxu0 %v2697
    %2926 = vmatprep.subr.bf16.mxu0 %v2694
    %2927 = vmatpush2.bf16.msra.mxu0 %v2693
    %2928 = vmatprep.mubr.bf16.mxu0 %v2062
    %2929 = vmatmul.mubr.bf16.gmra.mxu0 %v2061
    %v2930 = vpop.f32.mrf.mxu0
    %v2931 = vadd.f32 %v2888, %v2930
    %v2932 = vpop.f32.mrf.mxu0
    %v2933 = vadd.f32 %v2890, %v2932
    %v2934 = vpop.f32.mrf.mxu0
    %v2935 = vadd.f32 %v2892, %v2934
    %v2936 = vpop.f32.mrf.mxu0
    %v2937 = vadd.f32 %v2894, %v2936
    %2938 = vdwg.mxu0
    %2939 = vmatprep.subr.bf16.mxu0 %v2628
    %2940 = vmatpush1.bf16.msra.mxu0 %v2627
    %2941 = vmatprep.subr.bf16.mxu0 %v2624
    %2942 = vmatpush1.bf16.msra.mxu0 %v2623
    %2943 = vmatprep.subr.bf16.mxu0 %v2620
    %2944 = vmatpush1.bf16.msra.mxu0 %v2619
    %2945 = vmatprep.subr.bf16.mxu0 %v2616
    %2946 = vmatpush1.bf16.msra.mxu0 %v2615
    %2947 = vmatprep.subr.bf16.mxu0 %v2612
    %2948 = vmatpush1.bf16.msra.mxu0 %v2611
    %2949 = vmatprep.subr.bf16.mxu0 %v2608
    %2950 = vmatpush1.bf16.msra.mxu0 %v2607
    %2951 = vmatprep.subr.bf16.mxu0 %v2604
    %2952 = vmatpush1.bf16.msra.mxu0 %v2603
    %2953 = vmatprep.subr.bf16.mxu0 %v2600
    %2954 = vmatpush1.bf16.msra.mxu0 %v2599
    %2955 = vmatprep.subr.bf16.mxu0 %v2660
    %2956 = vmatpush2.bf16.msra.mxu0 %v2659
    %2957 = vmatprep.subr.bf16.mxu0 %v2656
    %2958 = vmatpush2.bf16.msra.mxu0 %v2655
    %2959 = vmatprep.subr.bf16.mxu0 %v2652
    %2960 = vmatpush2.bf16.msra.mxu0 %v2651
    %2961 = vmatprep.subr.bf16.mxu0 %v2648
    %2962 = vmatpush2.bf16.msra.mxu0 %v2647
    %2963 = vmatprep.subr.bf16.mxu0 %v2644
    %2964 = vmatpush2.bf16.msra.mxu0 %v2643
    %2965 = vmatprep.subr.bf16.mxu0 %v2640
    %2966 = vmatpush2.bf16.msra.mxu0 %v2639
    %2967 = vmatprep.subr.bf16.mxu0 %v2636
    %2968 = vmatpush2.bf16.msra.mxu0 %v2635
    %2969 = vmatprep.subr.bf16.mxu0 %v2632
    %2970 = vmatpush2.bf16.msra.mxu0 %v2631
    %2971 = vmatprep.mubr.bf16.mxu0 %v2060
    %2972 = vmatmul.mubr.bf16.gmra.mxu0 %v2059
    %v2973 = vpop.f32.mrf.mxu0
    %v2974 = vadd.f32 %v2204, %v2973
    %v2975 = vpop.f32.mrf.mxu0
    %v2976 = vadd.f32 %v2208, %v2975
    %v2977 = vpop.f32.mrf.mxu0
    %v2978 = vadd.f32 %v2204, %v2977
    %v2979 = vpop.f32.mrf.mxu0
    %v2980 = vadd.f32 %v2208, %v2979
    %2981 = vdwg.mxu0
    %2982 = vmatprep.subr.bf16.mxu0 %v2692
    %2983 = vmatpush1.bf16.msra.mxu0 %v2691
    %2984 = vmatprep.subr.bf16.mxu0 %v2688
    %2985 = vmatpush1.bf16.msra.mxu0 %v2687
    %2986 = vmatprep.subr.bf16.mxu0 %v2684
    %2987 = vmatpush1.bf16.msra.mxu0 %v2683
    %2988 = vmatprep.subr.bf16.mxu0 %v2680
    %2989 = vmatpush1.bf16.msra.mxu0 %v2679
    %2990 = vmatprep.subr.bf16.mxu0 %v2676
    %2991 = vmatpush1.bf16.msra.mxu0 %v2675
    %2992 = vmatprep.subr.bf16.mxu0 %v2672
    %2993 = vmatpush1.bf16.msra.mxu0 %v2671
    %2994 = vmatprep.subr.bf16.mxu0 %v2668
    %2995 = vmatpush1.bf16.msra.mxu0 %v2667
    %2996 = vmatprep.subr.bf16.mxu0 %v2664
    %2997 = vmatpush1.bf16.msra.mxu0 %v2663
    %2998 = vmatprep.subr.bf16.mxu0 %v2724
    %2999 = vmatpush2.bf16.msra.mxu0 %v2723
    %3000 = vmatprep.subr.bf16.mxu0 %v2720
    %3001 = vmatpush2.bf16.msra.mxu0 %v2719
    %3002 = vmatprep.subr.bf16.mxu0 %v2716
    %3003 = vmatpush2.bf16.msra.mxu0 %v2715
    %3004 = vmatprep.subr.bf16.mxu0 %v2712
    %3005 = vmatpush2.bf16.msra.mxu0 %v2711
    %3006 = vmatprep.subr.bf16.mxu0 %v2708
    %3007 = vmatpush2.bf16.msra.mxu0 %v2707
    %3008 = vmatprep.subr.bf16.mxu0 %v2704
    %3009 = vmatpush2.bf16.msra.mxu0 %v2703
    %3010 = vmatprep.subr.bf16.mxu0 %v2700
    %3011 = vmatpush2.bf16.msra.mxu0 %v2699
    %3012 = vmatprep.subr.bf16.mxu0 %v2696
    %3013 = vmatpush2.bf16.msra.mxu0 %v2695
    %3014 = vmatprep.mubr.bf16.mxu0 %v2062
    %3015 = vmatmul.mubr.bf16.gmra.mxu0 %v2061
    %v3016 = vpop.f32.mrf.mxu0
    %v3017 = vadd.f32 %v2974, %v3016
    %v3018 = vpop.f32.mrf.mxu0
    %v3019 = vadd.f32 %v2976, %v3018
    %v3020 = vpop.f32.mrf.mxu0
    %v3021 = vadd.f32 %v2978, %v3020
    %v3022 = vpop.f32.mrf.mxu0
    %v3023 = vadd.f32 %v2980, %v3022
    %3024 = vdwg.mxu0
    %v3025 = vpack.c.bf16 %v2935, %v2931
    %v3026 = vpack.c.bf16 %v2937, %v2933
    %v3027 = vpack.c.bf16 %v3021, %v3017
    %v3028 = vpack.c.bf16 %v3023, %v3019
    %v3033 = vunpack.c.l.b16 %v3025
    %v3034 = vunpack.c.l.b16 %v3026
    %v3035 = vunpack.c.l.b16 %v3027
    %v3036 = vunpack.c.l.b16 %v3028
    %v3037 = vunpack.c.h.b16 %v3025
    %v3038 = vunpack.c.h.b16 %v3026
    %v3039 = vunpack.c.h.b16 %v3027
    %v3040 = vunpack.c.h.b16 %v3028
    %v3041 = vpack.c.b16 %v3034, %v3033
    %v3042 = vpack.c.b16 %v3036, %v3035
    %v3043 = vpack.c.b16 %v3038, %v3037
    %v3044 = vpack.c.b16 %v3040, %v3039
    %3049 = vst [vmem:[%s9] sm:$0xff] %v3041
    %3050 = vst [vmem:[%s9 + $0x8] sm:$0xff] %v3042
    %3051 = vst [vmem:[%s9 + $0x10] sm:$0xff] %v3043
    %3052 = vst [vmem:[%s9 + $0x18] sm:$0xff] %v3044
    // Predicated region
    $region50: #{atmosphere_net_mlp.1} parent=1 // pred_check
      _
    $region51: #{atmosphere_net_mlp.1} parent=1 // pred_check_branch
      %3054 = sbr.rel (0) target = $region53
    $region52: #{atmosphere_net_mlp.1} parent=1 // pred_region
      _
    $region53: #{atmosphere_net_mlp.1} parent=1 // pred_fallthru
      _
    // Predicated region
    $region54: #{atmosphere_net_mlp.1} parent=1 // pred_check
      _
    $region55: #{atmosphere_net_mlp.1} parent=1 // pred_check_branch
      %3056 = sbr.rel (0) target = $region57
    $region56: #{atmosphere_net_mlp.1} parent=1 // pred_region
      _
    $region57: #{atmosphere_net_mlp.1} parent=1 // pred_fallthru
      _
    %3057 = vsyncpa [#allocation3], 1
    %3058 = vsyncpa [#allocation5], 1

</llo_original>
